<compile_context>
chip_gen: v7x
topology: tpu7x:2x2x1
jax: 0.10.0
libtpu: 0.0.40
codegen_flags: <defaults>
</compile_context>

<pallas_src>
import jax
import jax.numpy as jnp
from jax import lax
from jax.experimental import pallas as pl
from jax.experimental.pallas import tpu as pltpu


# ---------------------------------------------------------------------------
# Fused single-pass kernel (grid = (B,)): whole (S, D) slab per batch in VMEM.
# ---------------------------------------------------------------------------
def fused_kernel(x_ref, y_ref, z_ref, w_ref, u_ref, l_ref, out_ref, val_ref):
    v = jnp.dot(u_ref[0], l_ref[...], preferred_element_type=jnp.float32)   # (S, D)
    val_ref[0] = v.astype(val_ref.dtype)

    zt = z_ref[0]
    # acc = z^T @ v  -- contract the sequence axis directly (no XLU transpose)
    acc = lax.dot_general(zt, v.astype(zt.dtype), (((0,), (0,)), ((), ())),
                          preferred_element_type=jnp.float32)               # (D, D)
    # kv = w^T @ acc
    kv = lax.dot_general(w_ref[...].astype(jnp.float32), acc,
                         (((0,), (0,)), ((), ())),
                         preferred_element_type=jnp.float32)                # (D, D)
    # M = 2 * y @ kv   (the /0.5 scale folded into the small (D,D) tile)
    m = 2.0 * jnp.dot(y_ref[...].astype(jnp.float32), kv,
                      preferred_element_type=jnp.float32)                   # (D, D)
    out_ref[0] = jnp.dot(x_ref[0].astype(jnp.float32), m,
                         preferred_element_type=jnp.float32).astype(out_ref.dtype)


# ---------------------------------------------------------------------------
# Pass 1 (two-pass path): per-batch streaming over S tiles.
#   v_t    = u_t @ l                       (stored as `values`)
#   acc   += z_t^T @ v_t                   (f32 (D,D) VMEM scratch)
#   last t: M_b = 2 * y @ (w^T @ acc)      (per-batch (D,D) epilogue)
# ---------------------------------------------------------------------------
def pass1_kernel(z_ref, w_ref, u_ref, l_ref, y_ref, m_ref, val_ref, acc_ref):
    t = pl.program_id(1)

    @pl.when(t == 0)
    def _():
        acc_ref[...] = jnp.zeros_like(acc_ref)

    v = jnp.dot(u_ref[0], l_ref[...], preferred_element_type=jnp.float32)   # (TS, D)
    val_ref[0] = v.astype(val_ref.dtype)

    zt = z_ref[0]
    acc_ref[...] += lax.dot_general(
        zt, v.astype(zt.dtype), (((0,), (0,)), ((), ())),
        preferred_element_type=jnp.float32)

    @pl.when(t == pl.num_programs(1) - 1)
    def _():
        kv = lax.dot_general(w_ref[...].astype(jnp.float32), acc_ref[...],
                             (((0,), (0,)), ((), ())),
                             preferred_element_type=jnp.float32)
        m_ref[0] = 2.0 * jnp.dot(y_ref[...].astype(jnp.float32), kv,
                                 preferred_element_type=jnp.float32)


# ---------------------------------------------------------------------------
# Pass 2 (two-pass path): fully parallel over (batch, S tiles).
#   out_t = x_t @ M_b      (y and the 2.0 scale already folded into M)
# ---------------------------------------------------------------------------
def pass2_kernel(x_ref, m_ref, out_ref):
    out = jnp.dot(x_ref[0].astype(jnp.float32), m_ref[0],
                  preferred_element_type=jnp.float32)
    out_ref[0] = out.astype(out_ref.dtype)


def _pick_seq_tile(S, D, itemsize):
    # Largest S tile that divides S, keeps the sublane dim a multiple of 8 and
    # stays under a conservative VMEM budget (sized for v7x's 32 MiB default
    # scoped VMEM; v5e/v6e have more headroom).
    budget = 24 * 1024 * 1024
    for cand in (2048, 1024, 512, 256, 128, 64, 32, 16, 8):
        if S % cand != 0:
            continue
        # pass-1 live bytes: double-buffered z/u/values tiles + double-buffered
        # weights + f32 acc + M output block.
        per_step = (2 * 3 * cand * D * itemsize
                    + 2 * 3 * D * D * itemsize
                    + 3 * D * D * 4)
        if per_step <= budget:
            return cand
    return S   # full extent is always layout-legal


def sdpa_pallas(x, y, z, w, u, l):
    B, S, D = x.shape
    out_dtype = x.dtype              # follow input dtype (bf16 inputs -> bf16 out)
    isz = jnp.dtype(x.dtype).itemsize
    ts = _pick_seq_tile(S, D, isz)
    T = S // ts

    # TODO(synk): dropout has no probability defined in the module; eval-mode
    # dropout is the identity, which is what is implemented here.

    fused_bytes = 2 * 5 * S * D * isz + 3 * D * D * isz
    if T == 1 and fused_bytes <= 24 * 1024 * 1024:
        # ------------------ fused single-call path ------------------
        seq_full = pl.BlockSpec((1, S, D), lambda b: (b, 0, 0))
        wgt_full = pl.BlockSpec((D, D), lambda b: (0, 0))
        cost = pl.CostEstimate(
            flops=int(B * (6 * S * D * D + 4 * D ** 3)),
            transcendentals=0,
            bytes_accessed=int(5 * B * S * D * isz + 3 * D * D * isz),
        )
        out, values = pl.pallas_call(
            fused_kernel,
            out_shape=(
                jax.ShapeDtypeStruct((B, S, D), out_dtype),
                jax.ShapeDtypeStruct((B, S, D), out_dtype),
            ),
            grid_spec=pltpu.PrefetchScalarGridSpec(
                num_scalar_prefetch=0,
                grid=(B,),
                in_specs=[seq_full, wgt_full, seq_full, wgt_full,
                          seq_full, wgt_full],
                out_specs=[seq_full, seq_full],
            ),
            compiler_params=pltpu.CompilerParams(
                dimension_semantics=("parallel",)),
            cost_estimate=cost,
        )(x, y, z, w, u, l)
        return out, values

    # ------------------ two-pass streaming path ------------------
    seq_spec = pl.BlockSpec((1, ts, D), lambda b, t: (b, t, 0))
    wgt_spec = pl.BlockSpec((D, D), lambda b, t: (0, 0))   # grid-invariant
    m_spec = pl.BlockSpec((1, D, D), lambda b, t: (b, 0, 0))

    cost1 = pl.CostEstimate(
        flops=int(B * (4 * S * D * D + 4 * D ** 3)),
        transcendentals=0,
        bytes_accessed=int(3 * B * S * D * isz + 3 * D * D * isz + B * D * D * 4),
    )
    # pass 1: values = u@l and M = 2 * y @ w^T @ (z^T @ values), per batch
    m, values = pl.pallas_call(
        pass1_kernel,
        out_shape=(
            jax.ShapeDtypeStruct((B, D, D), jnp.float32),
            jax.ShapeDtypeStruct((B, S, D), out_dtype),
        ),
        grid_spec=pltpu.PrefetchScalarGridSpec(
            num_scalar_prefetch=0,
            grid=(B, T),
            in_specs=[seq_spec, wgt_spec, seq_spec, wgt_spec, wgt_spec],
            out_specs=[m_spec, seq_spec],
            scratch_shapes=[pltpu.VMEM((D, D), jnp.float32)],
        ),
        compiler_params=pltpu.CompilerParams(
            dimension_semantics=("parallel", "arbitrary")),
        cost_estimate=cost1,
    )(z, w, u, l, y)

    cost2 = pl.CostEstimate(
        flops=int(2 * B * S * D * D),
        transcendentals=0,
        bytes_accessed=int(2 * B * S * D * isz + B * D * D * 4),
    )
    # pass 2: out = x @ M, streamed over (batch, S tiles); pure read/write stream
    out = pl.pallas_call(
        pass2_kernel,
        out_shape=jax.ShapeDtypeStruct((B, S, D), out_dtype),
        grid_spec=pltpu.PrefetchScalarGridSpec(
            num_scalar_prefetch=0,
            grid=(B, T),
            in_specs=[seq_spec, m_spec],
            out_specs=seq_spec,
        ),
        compiler_params=pltpu.CompilerParams(
            dimension_semantics=("parallel", "parallel")),
        cost_estimate=cost2,
    )(x, m)

    return out, values


def sdpa_reference(x, y, z, w, u, l):
    hi = lax.Precision.HIGHEST
    q = jnp.matmul(x, y, precision=hi)
    k = jnp.swapaxes(jnp.matmul(z, w, precision=hi), -2, -1)
    v = jnp.matmul(u, l, precision=hi)
    scores = jnp.matmul(q, k, precision=hi) / 0.5
    out = jnp.matmul(scores, v, precision=hi)
    return out, v


def _rel_err(got, ref):
    got = got.astype(jnp.float32)
    ref = ref.astype(jnp.float32)
    return float(jnp.linalg.norm(got - ref) / (jnp.linalg.norm(ref) + 1e-12))


if __name__ == "__main__":
    key = jax.random.PRNGKey(0)

    def make_inputs(B, S, D, key):
        kx, ky, kz, kw, ku, kl = jax.random.split(key, 6)
        x = jax.random.normal(kx, (B, S, D), dtype=jnp.float32)
        z = jax.random.normal(kz, (B, S, D), dtype=jnp.float32)
        u = jax.random.normal(ku, (B, S, D), dtype=jnp.float32)
        y = jax.random.normal(ky, (D, D), dtype=jnp.float32) * 0.1
        w = jax.random.normal(kw, (D, D), dtype=jnp.float32) * 0.1
        l = jax.random.normal(kl, (D, D), dtype=jnp.float32) * 0.1
        return x, y, z, w, u, l

    # Case 1: small, lane-aligned shape (exercises the fused single-call path).
    k1, k2 = jax.random.split(key)
    args = make_inputs(2, 128, 128, k1)
    out, values = sdpa_pallas(*args)
    out = jax.block_until_ready(out)
    values = jax.block_until_ready(values)
    out_ref, values_ref = sdpa_reference(*args)
    assert _rel_err(out, out_ref) < 2e-3, "out mismatch (fused path)"
    assert _rel_err(values, values_ref) < 2e-3, "values mismatch (fused path)"

    # Case 2: longer sequence (exercises the two-pass streaming path, T > 1).
    args = make_inputs(2, 4096, 128, k2)
    out, values = sdpa_pallas(*args)
    out = jax.block_until_ready(out)
    values = jax.block_until_ready(values)
    out_ref, values_ref = sdpa_reference(*args)
    assert _rel_err(out, out_ref) < 2e-3, "out mismatch (two-pass path)"
    assert _rel_err(values, values_ref) < 2e-3, "values mismatch (two-pass path)"

    print("KERNEL_OK")
</pallas_src>

<mosaic_0001>
module attributes {stable_mosaic.version = 11 : i64} {
  func.func @fused_kernel(%arg0: i32, %arg1: memref<1x128x128xf32, #tpu.memory_space<vmem>>, %arg2: memref<128x128xf32, #tpu.memory_space<vmem>>, %arg3: memref<1x128x128xf32, #tpu.memory_space<vmem>>, %arg4: memref<128x128xf32, #tpu.memory_space<vmem>>, %arg5: memref<1x128x128xf32, #tpu.memory_space<vmem>>, %arg6: memref<128x128xf32, #tpu.memory_space<vmem>>, %arg7: memref<1x128x128xf32, #tpu.memory_space<vmem>>, %arg8: memref<1x128x128xf32, #tpu.memory_space<vmem>>) attributes {dimension_semantics = [#tpu.dimension_semantics<parallel>], iteration_bounds = array<i64: 2>, scalar_prefetch = 0 : i64, scratch_operands = 0 : i64, tpu.core_type = #tpu.core_type<tc>, window_params = [{transform_indices = @transform_0, window_bounds = array<i64: 1, 128, 128>}, {pipeline_mode = #tpu.pipeline_mode<synchronous>, transform_indices = @transform_1, window_bounds = array<i64: 128, 128>}, {transform_indices = @transform_2, window_bounds = array<i64: 1, 128, 128>}, {pipeline_mode = #tpu.pipeline_mode<synchronous>, transform_indices = @transform_3, window_bounds = array<i64: 128, 128>}, {transform_indices = @transform_4, window_bounds = array<i64: 1, 128, 128>}, {pipeline_mode = #tpu.pipeline_mode<synchronous>, transform_indices = @transform_5, window_bounds = array<i64: 128, 128>}, {transform_indices = @transform_6, window_bounds = array<i64: 1, 128, 128>}, {transform_indices = @transform_7, window_bounds = array<i64: 1, 128, 128>}]} {
    %c0 = arith.constant 0 : index
    %c0_0 = arith.constant 0 : index
    %c0_1 = arith.constant 0 : index
    %0 = vector.load %arg5[%c0, %c0_0, %c0_1] : memref<1x128x128xf32, #tpu.memory_space<vmem>>, vector<1x128x128xf32>
    %1 = vector.shape_cast %0 : vector<1x128x128xf32> to vector<128x128xf32>
    %c0_2 = arith.constant 0 : index
    %c0_3 = arith.constant 0 : index
    %2 = vector.load %arg6[%c0_2, %c0_3] : memref<128x128xf32, #tpu.memory_space<vmem>>, vector<128x128xf32>
    %cst = arith.constant dense<0.000000e+00> : vector<128x128xf32>
    %3 = tpu.matmul %1, %2, %cst {dimension_numbers = #tpu.dot_dimension_numbers<[1], [0], [0], [1], [0, 0, 1, 1], [], []>} : vector<128x128xf32>, vector<128x128xf32>, vector<128x128xf32> -> vector<128x128xf32>
    %c0_4 = arith.constant 0 : index
    %c0_5 = arith.constant 0 : index
    %c0_6 = arith.constant 0 : index
    %4 = vector.load %arg8[%c0_4, %c0_5, %c0_6] : memref<1x128x128xf32, #tpu.memory_space<vmem>>, vector<1x128x128xf32>
    %5 = vector.shape_cast %4 : vector<1x128x128xf32> to vector<128x128xf32>
    %6 = vector.shape_cast %3 : vector<128x128xf32> to vector<1x128x128xf32>
    tpu.vector_store %arg8[%c0_4, %c0_5, %c0_6], %6 {strides = array<i32>} : memref<1x128x128xf32, #tpu.memory_space<vmem>>, vector<1x128x128xf32>,
    %c0_7 = arith.constant 0 : index
    %c0_8 = arith.constant 0 : index
    %c0_9 = arith.constant 0 : index
    %7 = vector.load %arg3[%c0_7, %c0_8, %c0_9] : memref<1x128x128xf32, #tpu.memory_space<vmem>>, vector<1x128x128xf32>
    %8 = vector.shape_cast %7 : vector<1x128x128xf32> to vector<128x128xf32>
    %cst_10 = arith.constant dense<0.000000e+00> : vector<128x128xf32>
    %9 = tpu.matmul %8, %3, %cst_10 {dimension_numbers = #tpu.dot_dimension_numbers<[0], [0], [1], [1], [0, 1, 1, 1], [], []>} : vector<128x128xf32>, vector<128x128xf32>, vector<128x128xf32> -> vector<128x128xf32>
    %c0_11 = arith.constant 0 : index
    %c0_12 = arith.constant 0 : index
    %10 = vector.load %arg4[%c0_11, %c0_12] : memref<128x128xf32, #tpu.memory_space<vmem>>, vector<128x128xf32>
    %cst_13 = arith.constant dense<0.000000e+00> : vector<128x128xf32>
    %11 = tpu.matmul %10, %9, %cst_13 {dimension_numbers = #tpu.dot_dimension_numbers<[0], [0], [1], [1], [0, 1, 1, 1], [], []>} : vector<128x128xf32>, vector<128x128xf32>, vector<128x128xf32> -> vector<128x128xf32>
    %c0_14 = arith.constant 0 : index
    %c0_15 = arith.constant 0 : index
    %12 = vector.load %arg2[%c0_14, %c0_15] : memref<128x128xf32, #tpu.memory_space<vmem>>, vector<128x128xf32>
    %cst_16 = arith.constant dense<0.000000e+00> : vector<128x128xf32>
    %13 = tpu.matmul %12, %11, %cst_16 {dimension_numbers = #tpu.dot_dimension_numbers<[1], [0], [0], [1], [0, 0, 1, 1], [], []>} : vector<128x128xf32>, vector<128x128xf32>, vector<128x128xf32> -> vector<128x128xf32>
    %cst_17 = arith.constant 2.000000e+00 : f32
    %14 = vector.broadcast %cst_17 : f32 to vector<128x128xf32>
    %15 = arith.mulf %14, %13 : vector<128x128xf32>
    %c0_18 = arith.constant 0 : index
    %c0_19 = arith.constant 0 : index
    %c0_20 = arith.constant 0 : index
    %16 = vector.load %arg1[%c0_18, %c0_19, %c0_20] : memref<1x128x128xf32, #tpu.memory_space<vmem>>, vector<1x128x128xf32>
    %17 = vector.shape_cast %16 : vector<1x128x128xf32> to vector<128x128xf32>
    %cst_21 = arith.constant dense<0.000000e+00> : vector<128x128xf32>
    %18 = tpu.matmul %17, %15, %cst_21 {dimension_numbers = #tpu.dot_dimension_numbers<[1], [0], [0], [1], [0, 0, 1, 1], [], []>} : vector<128x128xf32>, vector<128x128xf32>, vector<128x128xf32> -> vector<128x128xf32>
    %c0_22 = arith.constant 0 : index
    %c0_23 = arith.constant 0 : index
    %c0_24 = arith.constant 0 : index
    %19 = vector.load %arg7[%c0_22, %c0_23, %c0_24] : memref<1x128x128xf32, #tpu.memory_space<vmem>>, vector<1x128x128xf32>
    %20 = vector.shape_cast %19 : vector<1x128x128xf32> to vector<128x128xf32>
    %21 = vector.shape_cast %18 : vector<128x128xf32> to vector<1x128x128xf32>
    tpu.vector_store %arg7[%c0_22, %c0_23, %c0_24], %21 {strides = array<i32>} : memref<1x128x128xf32, #tpu.memory_space<vmem>>, vector<1x128x128xf32>,
    return
  }
  func.func @transform_0(%arg0: i32) -> (i32, i32, i32) {
    %c0_i32 = arith.constant 0 : i32
    %c0_i32_0 = arith.constant 0 : i32
    %c0_i32_1 = arith.constant 0 : i32
    return %arg0, %c0_i32, %c0_i32_0 : i32, i32, i32
  }
  func.func @transform_1(%arg0: i32) -> (i32, i32) {
    %c0_i32 = arith.constant 0 : i32
    %c0_i32_0 = arith.constant 0 : i32
    %c0_i32_1 = arith.constant 0 : i32
    return %c0_i32, %c0_i32_0 : i32, i32
  }
  func.func @transform_2(%arg0: i32) -> (i32, i32, i32) {
    %c0_i32 = arith.constant 0 : i32
    %c0_i32_0 = arith.constant 0 : i32
    %c0_i32_1 = arith.constant 0 : i32
    return %arg0, %c0_i32, %c0_i32_0 : i32, i32, i32
  }
  func.func @transform_3(%arg0: i32) -> (i32, i32) {
    %c0_i32 = arith.constant 0 : i32
    %c0_i32_0 = arith.constant 0 : i32
    %c0_i32_1 = arith.constant 0 : i32
    return %c0_i32, %c0_i32_0 : i32, i32
  }
  func.func @transform_4(%arg0: i32) -> (i32, i32, i32) {
    %c0_i32 = arith.constant 0 : i32
    %c0_i32_0 = arith.constant 0 : i32
    %c0_i32_1 = arith.constant 0 : i32
    return %arg0, %c0_i32, %c0_i32_0 : i32, i32, i32
  }
  func.func @transform_5(%arg0: i32) -> (i32, i32) {
    %c0_i32 = arith.constant 0 : i32
    %c0_i32_0 = arith.constant 0 : i32
    %c0_i32_1 = arith.constant 0 : i32
    return %c0_i32, %c0_i32_0 : i32, i32
  }
  func.func @transform_6(%arg0: i32) -> (i32, i32, i32) {
    %c0_i32 = arith.constant 0 : i32
    %c0_i32_0 = arith.constant 0 : i32
    %c0_i32_1 = arith.constant 0 : i32
    return %arg0, %c0_i32, %c0_i32_0 : i32, i32, i32
  }
  func.func @transform_7(%arg0: i32) -> (i32, i32, i32) {
    %c0_i32 = arith.constant 0 : i32
    %c0_i32_0 = arith.constant 0 : i32
    %c0_i32_1 = arith.constant 0 : i32
    return %arg0, %c0_i32, %c0_i32_0 : i32, i32, i32
  }
}

</mosaic_0001>

<llo_original>
// kernel: tpu_custom_call.1
$region0: #{tpu_custom_call.1}
  #allocation0 [shape = 'u32[]', space=smem, size = 0x4, offset = 0x4, fixed_abs, tag = 'smem constant byte address 0x4 - core index']
  #allocation1 [shape = 'u32[144,128]{1,0:T(1,128)}', space=vmem, size = 0x12000, scoped, tag = 'internal scratch']
  %s0 = inlined_call_operand.hbm [shape: f32[2,128,128], index: 0, kind: input, shape index: {}]
  %s1 = inlined_call_operand.hbm [shape: f32[128,128], index: 1, kind: input, shape index: {}]
  %s2 = inlined_call_operand.hbm [shape: f32[2,128,128], index: 2, kind: input, shape index: {}]
  %s3 = inlined_call_operand.hbm [shape: f32[128,128], index: 3, kind: input, shape index: {}]
  %s4 = inlined_call_operand.hbm [shape: f32[2,128,128], index: 4, kind: input, shape index: {}]
  %s5 = inlined_call_operand.hbm [shape: f32[128,128], index: 5, kind: input, shape index: {}]
  %s6 = inlined_call_operand.hbm [shape: f32[2,128,128], index: 6, kind: output, shape index: {0}]
  %s7 = inlined_call_operand.hbm [shape: f32[2,128,128], index: 7, kind: output, shape index: {1}]
  %8 = xla_tuple %s6, %s7
  %s9 = sld [smem:[#allocation0]]
  $region89: #{tpu_custom_call.1} parent=0
    _
  %s11 = ssub.s32 1, %s9
  %s12 = scalar_select 0, %s11, %s9
  $region1: #{tpu_custom_call.1} parent=0
    #allocation2 [shape = 'u8[131072]{0}', space=vmem, size = 0x20000, scoped, tag = 'input window, operand 0']
    #allocation3 [shape = 's32[2]{0}', space=sflag, size = 0x8, scoped, tag = 'scoped memory for tpu_custom_call.1']
    #allocation4 [shape = 's32[2]{0}', space=sflag, size = 0x8, scoped, tag = 'scoped memory for tpu_custom_call.1']
    #allocation5 [shape = 'u8[65536]{0}', space=vmem, size = 0x10000, scoped, tag = 'input window, operand 1, single buffered']
    #allocation6 [shape = 's32[1]{0}', space=sflag, size = 0x4, scoped, tag = 'scoped memory for tpu_custom_call.1']
    #allocation7 [shape = 'u8[131072]{0}', space=vmem, size = 0x20000, scoped, tag = 'input window, operand 2']
    #allocation8 [shape = 'u8[65536]{0}', space=vmem, size = 0x10000, scoped, tag = 'input window, operand 3, single buffered']
    #allocation9 [shape = 'u8[131072]{0}', space=vmem, size = 0x20000, scoped, tag = 'input window, operand 4']
    #allocation10 [shape = 's32[2]{0}', space=sflag, size = 0x8, scoped, tag = 'scoped memory for tpu_custom_call.1']
    #allocation11 [shape = 'u8[65536]{0}', space=vmem, size = 0x10000, scoped, tag = 'input window, operand 5, single buffered']
    #allocation12 [shape = 'u8[131072]{0}', space=vmem, size = 0x20000, scoped, tag = 'output window, operand 0']
    #allocation13 [shape = 'u8[131072]{0}', space=vmem, size = 0x20000, scoped, tag = 'output window, operand 1']
    #allocation14 [shape = 's32[2]{0}', space=sflag, size = 0x8, scoped, tag = 'scoped memory for tpu_custom_call.1']
    %13 = vsyncpa [#allocation3], 0
    %s14 = scalar_lea.sflag [#allocation3], 1
    %15 = vsyncpa %s14, 0
    %16 = vsyncpa [#allocation6], 0
    %17 = vsyncpa [#allocation10], 0
    %s18 = scalar_lea.sflag [#allocation10], 1
    %19 = vsyncpa %s18, 0
    %20 = vsyncpa [#allocation4], 0
    %s21 = scalar_lea.sflag [#allocation4], 1
    %22 = vsyncpa %s21, 0
    %23 = vsyncpa [#allocation14], 0
    %s24 = scalar_lea.sflag [#allocation14], 1
    %25 = vsyncpa %s24, 0
    loop: start=0, step=1, limit=4
    $region2: #{tpu_custom_call.1} parent=1 // loop_pre_header
      _
    $region3: #{tpu_custom_call.1} parent=1 // loop_header
      %s27 = sphi 0, %s31
      %p28 = scmp.ge.s32.totalorder %s27, 4
      %s37 = sphi 0, %s39
      %s40 = sphi 0, %s37
      %s41 = sphi 0, %s40
      %s57 = sphi 0, %s41
      %s61 = sphi 0, %s61
      %s63 = sphi 0, %s61
      %s64 = sphi 0, %s63
      %s78 = sphi 0, %s64
      %s84 = sphi 0, %s86
      %s87 = sphi 0, %s84
      %s88 = sphi 0, %s87
      %s104 = sphi 0, %s88
      %s108 = sphi 0, %s108
      %s110 = sphi 0, %s108
      %s111 = sphi 0, %s110
      %s125 = sphi 0, %s111
      %s131 = sphi 0, %s133
      %s134 = sphi 0, %s131
      %s135 = sphi 0, %s134
      %s151 = sphi 0, %s135
      %s155 = sphi 0, %s155
      %s157 = sphi 0, %s155
      %s158 = sphi 0, %s157
      %s172 = sphi 0, %s158
      %s178 = sphi 0, %s180
      %s181 = sphi 0, %s178
      %s182 = sphi 0, %s181
      %s198 = sphi 0, %s182
      %s204 = sphi 0, %s206
      %s207 = sphi 0, %s204
      %s208 = sphi 0, %s207
      %s224 = sphi 0, %s208
    $region4: #{tpu_custom_call.1} parent=1 // loop_header_branch
      %30 = sbr.rel (%p28) target = $region8
    $region5: #{tpu_custom_call.1} parent=1 // loop_body
      %s32 = ssub.s32 %s27, 1
      %s33 = ssub.s32 %s27, 2
      %s34 = sadd.s32 %s27, 1
      %s35 = ssub.s32 %s27, %s34
      %p36 = scmp.eq.s32.totalorder %s35, 0
      %s38 = sadd.s32 %s37, 1
      %s39 = scalar_select %p36, %s37, %s38
      %p42 = pneg %p36
      %p43 = scmp.eq.s32.totalorder %s27, 1
      %p44 = por %p42, %p43
      %p45 = scmp.ne.s32.totalorder %s37, %s40
      %p46 = scmp.eq.s32.totalorder %s27, 0
      %p47 = por %p45, %p46
      %p48 = scmp.ne.s32.totalorder %s37, %s40
      %p49 = scmp.eq.s32.totalorder %s32, 1
      %p50 = por %p48, %p49
      %p51 = scmp.ne.s32.totalorder %s40, %s41
      %p52 = scmp.eq.s32.totalorder %s32, 0
      %p53 = por %p51, %p52
      %p54 = scmp.ne.s32.totalorder %s40, %s41
      %p55 = scmp.eq.s32.totalorder %s33, 1
      %p56 = por %p54, %p55
      %p58 = scmp.ne.s32.totalorder %s41, %s57
      %p59 = scmp.eq.s32.totalorder %s33, 0
      %p60 = por %p58, %p59
      %s62 = sadd.s32 %s61, 1
      %p65 = scmp.eq.s32.totalorder %s27, 1
      %p66 = scmp.ne.s32.totalorder %s61, %s63
      %p67 = scmp.eq.s32.totalorder %s27, 0
      %p68 = por %p66, %p67
      %p69 = scmp.ne.s32.totalorder %s61, %s63
      %p70 = scmp.eq.s32.totalorder %s32, 1
      %p71 = por %p69, %p70
      %p72 = scmp.ne.s32.totalorder %s63, %s64
      %p73 = scmp.eq.s32.totalorder %s32, 0
      %p74 = por %p72, %p73
      %p75 = scmp.ne.s32.totalorder %s63, %s64
      %p76 = scmp.eq.s32.totalorder %s33, 1
      %p77 = por %p75, %p76
      %p79 = scmp.ne.s32.totalorder %s64, %s78
      %p80 = scmp.eq.s32.totalorder %s33, 0
      %p81 = por %p79, %p80
      %s82 = ssub.s32 %s27, %s34
      %p83 = scmp.eq.s32.totalorder %s82, 0
      %s85 = sadd.s32 %s84, 1
      %s86 = scalar_select %p83, %s84, %s85
      %p89 = pneg %p83
      %p90 = scmp.eq.s32.totalorder %s27, 1
      %p91 = por %p89, %p90
      %p92 = scmp.ne.s32.totalorder %s84, %s87
      %p93 = scmp.eq.s32.totalorder %s27, 0
      %p94 = por %p92, %p93
      %p95 = scmp.ne.s32.totalorder %s84, %s87
      %p96 = scmp.eq.s32.totalorder %s32, 1
      %p97 = por %p95, %p96
      %p98 = scmp.ne.s32.totalorder %s87, %s88
      %p99 = scmp.eq.s32.totalorder %s32, 0
      %p100 = por %p98, %p99
      %p101 = scmp.ne.s32.totalorder %s87, %s88
      %p102 = scmp.eq.s32.totalorder %s33, 1
      %p103 = por %p101, %p102
      %p105 = scmp.ne.s32.totalorder %s88, %s104
      %p106 = scmp.eq.s32.totalorder %s33, 0
      %p107 = por %p105, %p106
      %s109 = sadd.s32 %s108, 1
      %p112 = scmp.eq.s32.totalorder %s27, 1
      %p113 = scmp.ne.s32.totalorder %s108, %s110
      %p114 = scmp.eq.s32.totalorder %s27, 0
      %p115 = por %p113, %p114
      %p116 = scmp.ne.s32.totalorder %s108, %s110
      %p117 = scmp.eq.s32.totalorder %s32, 1
      %p118 = por %p116, %p117
      %p119 = scmp.ne.s32.totalorder %s110, %s111
      %p120 = scmp.eq.s32.totalorder %s32, 0
      %p121 = por %p119, %p120
      %p122 = scmp.ne.s32.totalorder %s110, %s111
      %p123 = scmp.eq.s32.totalorder %s33, 1
      %p124 = por %p122, %p123
      %p126 = scmp.ne.s32.totalorder %s111, %s125
      %p127 = scmp.eq.s32.totalorder %s33, 0
      %p128 = por %p126, %p127
      %s129 = ssub.s32 %s27, %s34
      %p130 = scmp.eq.s32.totalorder %s129, 0
      %s132 = sadd.s32 %s131, 1
      %s133 = scalar_select %p130, %s131, %s132
      %p136 = pneg %p130
      %p137 = scmp.eq.s32.totalorder %s27, 1
      %p138 = por %p136, %p137
      %p139 = scmp.ne.s32.totalorder %s131, %s134
      %p140 = scmp.eq.s32.totalorder %s27, 0
      %p141 = por %p139, %p140
      %p142 = scmp.ne.s32.totalorder %s131, %s134
      %p143 = scmp.eq.s32.totalorder %s32, 1
      %p144 = por %p142, %p143
      %p145 = scmp.ne.s32.totalorder %s134, %s135
      %p146 = scmp.eq.s32.totalorder %s32, 0
      %p147 = por %p145, %p146
      %p148 = scmp.ne.s32.totalorder %s134, %s135
      %p149 = scmp.eq.s32.totalorder %s33, 1
      %p150 = por %p148, %p149
      %p152 = scmp.ne.s32.totalorder %s135, %s151
      %p153 = scmp.eq.s32.totalorder %s33, 0
      %p154 = por %p152, %p153
      %s156 = sadd.s32 %s155, 1
      %p159 = scmp.eq.s32.totalorder %s27, 1
      %p160 = scmp.ne.s32.totalorder %s155, %s157
      %p161 = scmp.eq.s32.totalorder %s27, 0
      %p162 = por %p160, %p161
      %p163 = scmp.ne.s32.totalorder %s155, %s157
      %p164 = scmp.eq.s32.totalorder %s32, 1
      %p165 = por %p163, %p164
      %p166 = scmp.ne.s32.totalorder %s157, %s158
      %p167 = scmp.eq.s32.totalorder %s32, 0
      %p168 = por %p166, %p167
      %p169 = scmp.ne.s32.totalorder %s157, %s158
      %p170 = scmp.eq.s32.totalorder %s33, 1
      %p171 = por %p169, %p170
      %p173 = scmp.ne.s32.totalorder %s158, %s172
      %p174 = scmp.eq.s32.totalorder %s33, 0
      %p175 = por %p173, %p174
      %s176 = ssub.s32 %s27, %s34
      %p177 = scmp.eq.s32.totalorder %s176, 0
      %s179 = sadd.s32 %s178, 1
      %s180 = scalar_select %p177, %s178, %s179
      %p183 = pneg %p177
      %p184 = scmp.eq.s32.totalorder %s27, 1
      %p185 = por %p183, %p184
      %p186 = scmp.ne.s32.totalorder %s178, %s181
      %p187 = scmp.eq.s32.totalorder %s27, 0
      %p188 = por %p186, %p187
      %p189 = scmp.ne.s32.totalorder %s178, %s181
      %p190 = scmp.eq.s32.totalorder %s32, 1
      %p191 = por %p189, %p190
      %p192 = scmp.ne.s32.totalorder %s181, %s182
      %p193 = scmp.eq.s32.totalorder %s32, 0
      %p194 = por %p192, %p193
      %p195 = scmp.ne.s32.totalorder %s181, %s182
      %p196 = scmp.eq.s32.totalorder %s33, 1
      %p197 = por %p195, %p196
      %p199 = scmp.ne.s32.totalorder %s182, %s198
      %p200 = scmp.eq.s32.totalorder %s33, 0
      %p201 = por %p199, %p200
      %s202 = ssub.s32 %s27, %s34
      %p203 = scmp.eq.s32.totalorder %s202, 0
      %s205 = sadd.s32 %s204, 1
      %s206 = scalar_select %p203, %s204, %s205
      %p209 = pneg %p203
      %p210 = scmp.eq.s32.totalorder %s27, 1
      %p211 = por %p209, %p210
      %p212 = scmp.ne.s32.totalorder %s204, %s207
      %p213 = scmp.eq.s32.totalorder %s27, 0
      %p214 = por %p212, %p213
      %p215 = scmp.ne.s32.totalorder %s204, %s207
      %p216 = scmp.eq.s32.totalorder %s32, 1
      %p217 = por %p215, %p216
      %p218 = scmp.ne.s32.totalorder %s207, %s208
      %p219 = scmp.eq.s32.totalorder %s32, 0
      %p220 = por %p218, %p219
      %p221 = scmp.ne.s32.totalorder %s207, %s208
      %p222 = scmp.eq.s32.totalorder %s33, 1
      %p223 = por %p221, %p222
      %p225 = scmp.ne.s32.totalorder %s208, %s224
      %p226 = scmp.eq.s32.totalorder %s33, 0
      %p227 = por %p225, %p226
      %p228 = scmp.le.s32.totalorder 1, %s27
      %p229 = scmp.lt.s32.totalorder %s27, 3
      %p230 = pnand %p228, %p229
      %p231 = pneg %p230
      // Predicated region
      $region9: #{tpu_custom_call.1} parent=5 // pred_check
        _
      $region10: #{tpu_custom_call.1} parent=5 // pred_check_branch
        %233 = sbr.rel (%p230) target = $region12
      $region11: #{tpu_custom_call.1} parent=5 // pred_region
        %s234 = ssub.s32 %s27, 1
        // Predicated region
        $region13: #{tpu_custom_call.1} parent=11 // pred_check
          %p235 = pneg %p74
        $region14: #{tpu_custom_call.1} parent=11 // pred_check_branch
          %237 = sbr.rel (%p235) target = $region16
        $region15: #{tpu_custom_call.1} parent=11 // pred_region
          %s239 = ssub.s32 2048, 2048
          %240 = vsyncadd [#allocation6], %s239
          %s241 = sshll.u32 [#allocation5], 4
          %s242 = int_to_ptr.vmem [resolvable:$true] %s241
          %247 = dma.hbm_to_vmem [thread:$0]  %s1, 2048, %s242, [#allocation6], 128, 128, 8
        $region16: #{tpu_custom_call.1} parent=11 // pred_fallthru
          _
        // Predicated region
        $region17: #{tpu_custom_call.1} parent=11 // pred_check
          %p248 = pneg %p121
        $region18: #{tpu_custom_call.1} parent=11 // pred_check_branch
          %250 = sbr.rel (%p248) target = $region20
        $region19: #{tpu_custom_call.1} parent=11 // pred_region
          %s252 = ssub.s32 2048, 2048
          %253 = vsyncadd [#allocation6], %s252
          %s254 = sshll.u32 [#allocation8], 4
          %s255 = int_to_ptr.vmem [resolvable:$true] %s254
          %260 = dma.hbm_to_vmem [thread:$0]  %s3, 2048, %s255, [#allocation6], 128, 128, 8
        $region20: #{tpu_custom_call.1} parent=11 // pred_fallthru
          _
        // Predicated region
        $region21: #{tpu_custom_call.1} parent=11 // pred_check
          %p261 = pneg %p168
        $region22: #{tpu_custom_call.1} parent=11 // pred_check_branch
          %263 = sbr.rel (%p261) target = $region24
        $region23: #{tpu_custom_call.1} parent=11 // pred_region
          %s265 = ssub.s32 2048, 2048
          %266 = vsyncadd [#allocation10], %s265
          %s267 = sshll.u32 [#allocation11], 4
          %s268 = int_to_ptr.vmem [resolvable:$true] %s267
          %273 = dma.hbm_to_vmem [thread:$0]  %s5, 2048, %s268, [#allocation10], 128, 128, 8
        $region24: #{tpu_custom_call.1} parent=11 // pred_fallthru
          _
      $region12: #{tpu_custom_call.1} parent=5 // pred_fallthru
        _
      %p274 = scmp.lt.s32.totalorder %s27, 2
      // Predicated region
      $region25: #{tpu_custom_call.1} parent=5 // pred_check
        %p275 = pneg %p274
      $region26: #{tpu_custom_call.1} parent=5 // pred_check_branch
        %277 = sbr.rel (%p275) target = $region28
      $region27: #{tpu_custom_call.1} parent=5 // pred_region
        // Predicated region
        $region29: #{tpu_custom_call.1} parent=27 // pred_check
          %p278 = pneg %p47
        $region30: #{tpu_custom_call.1} parent=27 // pred_check_branch
          %280 = sbr.rel (%p278) target = $region32
        $region31: #{tpu_custom_call.1} parent=27 // pred_region
          %s281 = sand.u32 %s27, 1
          %s282 = scalar_lea.sflag [#allocation3], %s281
          %s283 = sand.u32 %s37, 1
          %s284 = smul.addr %s283, 128
          %s285 = scalar_lea.vmem [#allocation2], %s284
          %s287 = ssub.s32 2048, 2048
          %288 = vsyncadd %s282, %s287
          %s289 = smul.addr %s27, 16
          %s290 = smul.addr %s289, 128
          %s291 = scalar_lea.hbm %s0, %s290
          %s292 = sshll.u32 %s285, 4
          %s293 = int_to_ptr.vmem [resolvable:$true] %s292
          %298 = dma.hbm_to_vmem [thread:$0]  %s291, 2048, %s293, %s282, 128, 128, 8
        $region32: #{tpu_custom_call.1} parent=27 // pred_fallthru
          _
        // Predicated region
        $region33: #{tpu_custom_call.1} parent=27 // pred_check
          %p299 = pneg %p94
        $region34: #{tpu_custom_call.1} parent=27 // pred_check_branch
          %301 = sbr.rel (%p299) target = $region36
        $region35: #{tpu_custom_call.1} parent=27 // pred_region
          %s302 = sand.u32 %s27, 1
          %s303 = scalar_lea.sflag [#allocation3], %s302
          %s304 = sand.u32 %s84, 1
          %s305 = smul.addr %s304, 128
          %s306 = scalar_lea.vmem [#allocation7], %s305
          %s308 = ssub.s32 2048, 2048
          %309 = vsyncadd %s303, %s308
          %s310 = smul.addr %s27, 16
          %s311 = smul.addr %s310, 128
          %s312 = scalar_lea.hbm %s2, %s311
          %s313 = sshll.u32 %s306, 4
          %s314 = int_to_ptr.vmem [resolvable:$true] %s313
          %319 = dma.hbm_to_vmem [thread:$0]  %s312, 2048, %s314, %s303, 128, 128, 8
        $region36: #{tpu_custom_call.1} parent=27 // pred_fallthru
          _
        // Predicated region
        $region37: #{tpu_custom_call.1} parent=27 // pred_check
          %p320 = pneg %p141
        $region38: #{tpu_custom_call.1} parent=27 // pred_check_branch
          %322 = sbr.rel (%p320) target = $region40
        $region39: #{tpu_custom_call.1} parent=27 // pred_region
          %s323 = sand.u32 %s27, 1
          %s324 = scalar_lea.sflag [#allocation10], %s323
          %s325 = sand.u32 %s131, 1
          %s326 = smul.addr %s325, 128
          %s327 = scalar_lea.vmem [#allocation9], %s326
          %s329 = ssub.s32 2048, 2048
          %330 = vsyncadd %s324, %s329
          %s331 = smul.addr %s27, 16
          %s332 = smul.addr %s331, 128
          %s333 = scalar_lea.hbm %s4, %s332
          %s334 = sshll.u32 %s327, 4
          %s335 = int_to_ptr.vmem [resolvable:$true] %s334
          %340 = dma.hbm_to_vmem [thread:$0]  %s333, 2048, %s335, %s324, 128, 128, 8
        $region40: #{tpu_custom_call.1} parent=27 // pred_fallthru
          _
      $region28: #{tpu_custom_call.1} parent=5 // pred_fallthru
        _
      %p341 = scmp.le.s32.totalorder 1, %s27
      %p342 = scmp.lt.s32.totalorder %s27, 3
      %p343 = pnand %p341, %p342
      %p344 = pneg %p343
      // Predicated region
      $region41: #{tpu_custom_call.1} parent=5 // pred_check
        _
      $region42: #{tpu_custom_call.1} parent=5 // pred_check_branch
        %346 = sbr.rel (%p343) target = $region44
      $region43: #{tpu_custom_call.1} parent=5 // pred_region
        %s347 = ssub.s32 %s27, 1
        %s348 = sand.u32 %s32, 1
        %s349 = scalar_lea.sflag [#allocation3], %s348
        %s350 = sand.u32 %s40, 1
        %s351 = smul.addr %s350, 128
        %s352 = scalar_lea.vmem [#allocation2], %s351
        // Predicated region
        $region45: #{tpu_custom_call.1} parent=43 // pred_check
          %p353 = pneg %p53
        $region46: #{tpu_custom_call.1} parent=43 // pred_check_branch
          %355 = sbr.rel (%p353) target = $region48
        $region47: #{tpu_custom_call.1} parent=43 // pred_region
          %356 = dma.done %s349, 2048
        $region48: #{tpu_custom_call.1} parent=43 // pred_fallthru
          _
        // Predicated region
        $region49: #{tpu_custom_call.1} parent=43 // pred_check
          %p357 = pneg %p74
        $region50: #{tpu_custom_call.1} parent=43 // pred_check_branch
          %359 = sbr.rel (%p357) target = $region52
        $region51: #{tpu_custom_call.1} parent=43 // pred_region
          %360 = dma.done [#allocation6], 2048
        $region52: #{tpu_custom_call.1} parent=43 // pred_fallthru
          _
        %s361 = sand.u32 %s32, 1
        %s362 = scalar_lea.sflag [#allocation3], %s361
        %s363 = sand.u32 %s87, 1
        %s364 = smul.addr %s363, 128
        %s365 = scalar_lea.vmem [#allocation7], %s364
        // Predicated region
        $region53: #{tpu_custom_call.1} parent=43 // pred_check
          %p366 = pneg %p100
        $region54: #{tpu_custom_call.1} parent=43 // pred_check_branch
          %368 = sbr.rel (%p366) target = $region56
        $region55: #{tpu_custom_call.1} parent=43 // pred_region
          %369 = dma.done %s362, 2048
        $region56: #{tpu_custom_call.1} parent=43 // pred_fallthru
          _
        // Predicated region
        $region57: #{tpu_custom_call.1} parent=43 // pred_check
          %p370 = pneg %p121
        $region58: #{tpu_custom_call.1} parent=43 // pred_check_branch
          %372 = sbr.rel (%p370) target = $region60
        $region59: #{tpu_custom_call.1} parent=43 // pred_region
          %373 = dma.done [#allocation6], 2048
        $region60: #{tpu_custom_call.1} parent=43 // pred_fallthru
          _
        %s374 = sand.u32 %s32, 1
        %s375 = scalar_lea.sflag [#allocation10], %s374
        %s376 = sand.u32 %s134, 1
        %s377 = smul.addr %s376, 128
        %s378 = scalar_lea.vmem [#allocation9], %s377
        // Predicated region
        $region61: #{tpu_custom_call.1} parent=43 // pred_check
          %p379 = pneg %p147
        $region62: #{tpu_custom_call.1} parent=43 // pred_check_branch
          %381 = sbr.rel (%p379) target = $region64
        $region63: #{tpu_custom_call.1} parent=43 // pred_region
          %382 = dma.done %s375, 2048
        $region64: #{tpu_custom_call.1} parent=43 // pred_fallthru
          _
        // Predicated region
        $region65: #{tpu_custom_call.1} parent=43 // pred_check
          %p383 = pneg %p168
        $region66: #{tpu_custom_call.1} parent=43 // pred_check_branch
          %385 = sbr.rel (%p383) target = $region68
        $region67: #{tpu_custom_call.1} parent=43 // pred_region
          %386 = dma.done [#allocation10], 2048
        $region68: #{tpu_custom_call.1} parent=43 // pred_fallthru
          _
        %s387 = sand.u32 %s32, 1
        %s388 = scalar_lea.sflag [#allocation3], %s387
        %s389 = sand.u32 %s40, 1
        %s390 = smul.addr %s389, 128
        %s391 = scalar_lea.vmem [#allocation2], %s390
        %p392 = pneg %p53
        %p393 = pneg %p50
        %p394 = pneg %p74
        %p395 = pneg %p71
        %s396 = sand.u32 %s32, 1
        %s397 = scalar_lea.sflag [#allocation3], %s396
        %s398 = sand.u32 %s87, 1
        %s399 = smul.addr %s398, 128
        %s400 = scalar_lea.vmem [#allocation7], %s399
        %p401 = pneg %p100
        %p402 = pneg %p97
        %p403 = pneg %p121
        %p404 = pneg %p118
        %s405 = sand.u32 %s32, 1
        %s406 = scalar_lea.sflag [#allocation10], %s405
        %s407 = sand.u32 %s134, 1
        %s408 = smul.addr %s407, 128
        %s409 = scalar_lea.vmem [#allocation9], %s408
        %p410 = pneg %p147
        %p411 = pneg %p144
        %p412 = pneg %p168
        %p413 = pneg %p165
        %p414 = pneg %p194
        %p415 = pneg %p191
        %s416 = sand.u32 %s181, 1
        %s417 = scalar_lea.sflag [#allocation4], %s416
        %s418 = sand.u32 %s181, 1
        %s419 = smul.addr %s418, 128
        %s420 = scalar_lea.vmem [#allocation12], %s419
        %p421 = pneg %p220
        %p422 = pneg %p217
        %s423 = sand.u32 %s207, 1
        %s424 = scalar_lea.sflag [#allocation14], %s423
        %s425 = sand.u32 %s207, 1
        %s426 = smul.addr %s425, 128
        %s427 = scalar_lea.vmem [#allocation13], %s426
        %v428 = vld [vmem:[%s378] sm:$0xff]
        %v429 = vld [vmem:[%s378 + $0x8] sm:$0xff]
        %v430 = vld [vmem:[%s378 + $0x10] sm:$0xff]
        %v431 = vld [vmem:[%s378 + $0x18] sm:$0xff]
        %v432 = vld [vmem:[%s378 + $0x20] sm:$0xff]
        %v433 = vld [vmem:[%s378 + $0x28] sm:$0xff]
        %v434 = vld [vmem:[%s378 + $0x30] sm:$0xff]
        %v435 = vld [vmem:[%s378 + $0x38] sm:$0xff]
        %v436 = vld [vmem:[%s378 + $0x40] sm:$0xff]
        %v437 = vld [vmem:[%s378 + $0x48] sm:$0xff]
        %v438 = vld [vmem:[%s378 + $0x50] sm:$0xff]
        %v439 = vld [vmem:[%s378 + $0x58] sm:$0xff]
        %v440 = vld [vmem:[%s378 + $0x60] sm:$0xff]
        %v441 = vld [vmem:[%s378 + $0x68] sm:$0xff]
        %v442 = vld [vmem:[%s378 + $0x70] sm:$0xff]
        %v443 = vld [vmem:[%s378 + $0x78] sm:$0xff]
        %v444 = vld [vmem:[#allocation11] sm:$0xff]
        %v445 = vld [vmem:[#allocation11 + $0x8] sm:$0xff]
        %v446 = vld [vmem:[#allocation11 + $0x10] sm:$0xff]
        %v447 = vld [vmem:[#allocation11 + $0x18] sm:$0xff]
        %v448 = vld [vmem:[#allocation11 + $0x20] sm:$0xff]
        %v449 = vld [vmem:[#allocation11 + $0x28] sm:$0xff]
        %v450 = vld [vmem:[#allocation11 + $0x30] sm:$0xff]
        %v451 = vld [vmem:[#allocation11 + $0x38] sm:$0xff]
        %v452 = vld [vmem:[#allocation11 + $0x40] sm:$0xff]
        %v453 = vld [vmem:[#allocation11 + $0x48] sm:$0xff]
        %v454 = vld [vmem:[#allocation11 + $0x50] sm:$0xff]
        %v455 = vld [vmem:[#allocation11 + $0x58] sm:$0xff]
        %v456 = vld [vmem:[#allocation11 + $0x60] sm:$0xff]
        %v457 = vld [vmem:[#allocation11 + $0x68] sm:$0xff]
        %v458 = vld [vmem:[#allocation11 + $0x70] sm:$0xff]
        %v459 = vld [vmem:[#allocation11 + $0x78] sm:$0xff]
        %460 = vmatprep.subr.mxu0 0.0
        %461 = vmatpush1.msra.mxu0 %v444
        %462 = vmatprep.subr.mxu0 0.0
        %463 = vmatpush1.msra.mxu0 %v445
        %464 = vmatprep.subr.mxu0 0.0
        %465 = vmatpush1.msra.mxu0 %v446
        %466 = vmatprep.subr.mxu0 0.0
        %467 = vmatpush1.msra.mxu0 %v447
        %468 = vmatprep.subr.mxu0 0.0
        %469 = vmatpush1.msra.mxu0 %v448
        %470 = vmatprep.subr.mxu0 0.0
        %471 = vmatpush1.msra.mxu0 %v449
        %472 = vmatprep.subr.mxu0 0.0
        %473 = vmatpush1.msra.mxu0 %v450
        %474 = vmatprep.subr.mxu0 0.0
        %475 = vmatpush1.msra.mxu0 %v451
        %476 = vmatprep.subr.mxu0 0.0
        %477 = vmatpush1.msra.mxu0 %v452
        %478 = vmatprep.subr.mxu0 0.0
        %479 = vmatpush1.msra.mxu0 %v453
        %480 = vmatprep.subr.mxu0 0.0
        %481 = vmatpush1.msra.mxu0 %v454
        %482 = vmatprep.subr.mxu0 0.0
        %483 = vmatpush1.msra.mxu0 %v455
        %484 = vmatprep.subr.mxu0 0.0
        %485 = vmatpush1.msra.mxu0 %v456
        %486 = vmatprep.subr.mxu0 0.0
        %487 = vmatpush1.msra.mxu0 %v457
        %488 = vmatprep.subr.mxu0 0.0
        %489 = vmatpush1.msra.mxu0 %v458
        %490 = vmatprep.subr.mxu0 0.0
        %491 = vmatpush1.msra.mxu0 %v459
        %492 = vmatprep.subr.mxu0 0.0
        %493 = vmatpush1.msra.mxu0 0.0
        %494 = vmatprep.subr.mxu0 0.0
        %495 = vmatpush1.msra.mxu0 0.0
        %496 = vmatprep.subr.mxu0 0.0
        %497 = vmatpush1.msra.mxu0 0.0
        %498 = vmatprep.subr.mxu0 0.0
        %499 = vmatpush1.msra.mxu0 0.0
        %500 = vmatprep.subr.mxu0 0.0
        %501 = vmatpush1.msra.mxu0 0.0
        %502 = vmatprep.subr.mxu0 0.0
        %503 = vmatpush1.msra.mxu0 0.0
        %504 = vmatprep.subr.mxu0 0.0
        %505 = vmatpush1.msra.mxu0 0.0
        %506 = vmatprep.subr.mxu0 0.0
        %507 = vmatpush1.msra.mxu0 0.0
        %508 = vmatprep.subr.mxu0 0.0
        %509 = vmatpush1.msra.mxu0 0.0
        %510 = vmatprep.subr.mxu0 0.0
        %511 = vmatpush1.msra.mxu0 0.0
        %512 = vmatprep.subr.mxu0 0.0
        %513 = vmatpush1.msra.mxu0 0.0
        %514 = vmatprep.subr.mxu0 0.0
        %515 = vmatpush1.msra.mxu0 0.0
        %516 = vmatprep.subr.mxu0 0.0
        %517 = vmatpush1.msra.mxu0 0.0
        %518 = vmatprep.subr.mxu0 0.0
        %519 = vmatpush1.msra.mxu0 0.0
        %520 = vmatprep.subr.mxu0 0.0
        %521 = vmatpush1.msra.mxu0 0.0
        %522 = vmatprep.subr.mxu0 0.0
        %523 = vmatpush1.msra.mxu0 0.0
        %524 = vmatprep.mubr.f32.mxu0 0.0
        %525 = vmatmul.mubr.f32.gmra.mrb[0].mxu0 %v428
        %v526 = vpop.f32.mrb[0].mxu0
        %v527 = vadd.f32 0.0, %v526
        %v528 = vpop.f32.mrb[0].mxu0
        %529 = vmatprep.mubr.f32.mxu0 0.0
        %530 = vmatmul.mubr.f32.gmra.mrb[0].mxu0 %v429
        %v531 = vpop.f32.mrb[0].mxu0
        %v532 = vadd.f32 0.0, %v531
        %v533 = vpop.f32.mrb[0].mxu0
        %534 = vmatprep.mubr.f32.mxu0 0.0
        %535 = vmatmul.mubr.f32.gmra.mrb[0].mxu0 %v430
        %v536 = vpop.f32.mrb[0].mxu0
        %v537 = vadd.f32 0.0, %v536
        %v538 = vpop.f32.mrb[0].mxu0
        %539 = vmatprep.mubr.f32.mxu0 0.0
        %540 = vmatmul.mubr.f32.gmra.mrb[0].mxu0 %v431
        %v541 = vpop.f32.mrb[0].mxu0
        %v542 = vadd.f32 0.0, %v541
        %v543 = vpop.f32.mrb[0].mxu0
        %544 = vmatprep.mubr.f32.mxu0 0.0
        %545 = vmatmul.mubr.f32.gmra.mrb[0].mxu0 %v432
        %v546 = vpop.f32.mrb[0].mxu0
        %v547 = vadd.f32 0.0, %v546
        %v548 = vpop.f32.mrb[0].mxu0
        %549 = vmatprep.mubr.f32.mxu0 0.0
        %550 = vmatmul.mubr.f32.gmra.mrb[0].mxu0 %v433
        %v551 = vpop.f32.mrb[0].mxu0
        %v552 = vadd.f32 0.0, %v551
        %v553 = vpop.f32.mrb[0].mxu0
        %554 = vmatprep.mubr.f32.mxu0 0.0
        %555 = vmatmul.mubr.f32.gmra.mrb[0].mxu0 %v434
        %v556 = vpop.f32.mrb[0].mxu0
        %v557 = vadd.f32 0.0, %v556
        %v558 = vpop.f32.mrb[0].mxu0
        %559 = vmatprep.mubr.f32.mxu0 0.0
        %560 = vmatmul.mubr.f32.gmra.mrb[0].mxu0 %v435
        %v561 = vpop.f32.mrb[0].mxu0
        %v562 = vadd.f32 0.0, %v561
        %v563 = vpop.f32.mrb[0].mxu0
        %564 = vmatprep.mubr.f32.mxu0 0.0
        %565 = vmatmul.mubr.f32.gmra.mrb[0].mxu0 %v436
        %v566 = vpop.f32.mrb[0].mxu0
        %v567 = vadd.f32 0.0, %v566
        %v568 = vpop.f32.mrb[0].mxu0
        %569 = vmatprep.mubr.f32.mxu0 0.0
        %570 = vmatmul.mubr.f32.gmra.mrb[0].mxu0 %v437
        %v571 = vpop.f32.mrb[0].mxu0
        %v572 = vadd.f32 0.0, %v571
        %v573 = vpop.f32.mrb[0].mxu0
        %574 = vmatprep.mubr.f32.mxu0 0.0
        %575 = vmatmul.mubr.f32.gmra.mrb[0].mxu0 %v438
        %v576 = vpop.f32.mrb[0].mxu0
        %v577 = vadd.f32 0.0, %v576
        %v578 = vpop.f32.mrb[0].mxu0
        %579 = vmatprep.mubr.f32.mxu0 0.0
        %580 = vmatmul.mubr.f32.gmra.mrb[0].mxu0 %v439
        %v581 = vpop.f32.mrb[0].mxu0
        %v582 = vadd.f32 0.0, %v581
        %v583 = vpop.f32.mrb[0].mxu0
        %584 = vmatprep.mubr.f32.mxu0 0.0
        %585 = vmatmul.mubr.f32.gmra.mrb[0].mxu0 %v440
        %v586 = vpop.f32.mrb[0].mxu0
        %v587 = vadd.f32 0.0, %v586
        %v588 = vpop.f32.mrb[0].mxu0
        %589 = vmatprep.mubr.f32.mxu0 0.0
        %590 = vmatmul.mubr.f32.gmra.mrb[0].mxu0 %v441
        %v591 = vpop.f32.mrb[0].mxu0
        %v592 = vadd.f32 0.0, %v591
        %v593 = vpop.f32.mrb[0].mxu0
        %594 = vmatprep.mubr.f32.mxu0 0.0
        %595 = vmatmul.mubr.f32.gmra.mrb[0].mxu0 %v442
        %v596 = vpop.f32.mrb[0].mxu0
        %v597 = vadd.f32 0.0, %v596
        %v598 = vpop.f32.mrb[0].mxu0
        %599 = vmatprep.mubr.f32.mxu0 0.0
        %600 = vmatmul.mubr.f32.gmra.mrb[0].mxu0 %v443
        %v601 = vpop.f32.mrb[0].mxu0
        %v602 = vadd.f32 0.0, %v601
        %v603 = vpop.f32.mrb[0].mxu0
        %604 = vdwg.mxu0
        %605 = vst [vmem:[%s427] sm:$0xff] %v527
        %606 = vst [vmem:[%s427 + $0x8] sm:$0xff] %v532
        %607 = vst [vmem:[%s427 + $0x10] sm:$0xff] %v537
        %608 = vst [vmem:[%s427 + $0x18] sm:$0xff] %v542
        %609 = vst [vmem:[%s427 + $0x20] sm:$0xff] %v547
        %610 = vst [vmem:[%s427 + $0x28] sm:$0xff] %v552
        %611 = vst [vmem:[%s427 + $0x30] sm:$0xff] %v557
        %612 = vst [vmem:[%s427 + $0x38] sm:$0xff] %v562
        %613 = vst [vmem:[%s427 + $0x40] sm:$0xff] %v567
        %614 = vst [vmem:[%s427 + $0x48] sm:$0xff] %v572
        %615 = vst [vmem:[%s427 + $0x50] sm:$0xff] %v577
        %616 = vst [vmem:[%s427 + $0x58] sm:$0xff] %v582
        %617 = vst [vmem:[%s427 + $0x60] sm:$0xff] %v587
        %618 = vst [vmem:[%s427 + $0x68] sm:$0xff] %v592
        %619 = vst [vmem:[%s427 + $0x70] sm:$0xff] %v597
        %620 = vst [vmem:[%s427 + $0x78] sm:$0xff] %v602
        %v621 = vld [vmem:[%s365] sm:$0xff]
        %v622 = vld [vmem:[%s365 + $0x8] sm:$0xff]
        %v623 = vld [vmem:[%s365 + $0x10] sm:$0xff]
        %v624 = vld [vmem:[%s365 + $0x18] sm:$0xff]
        %v625 = vld [vmem:[%s365 + $0x20] sm:$0xff]
        %v626 = vld [vmem:[%s365 + $0x28] sm:$0xff]
        %v627 = vld [vmem:[%s365 + $0x30] sm:$0xff]
        %v628 = vld [vmem:[%s365 + $0x38] sm:$0xff]
        %v629 = vld [vmem:[%s365 + $0x40] sm:$0xff]
        %v630 = vld [vmem:[%s365 + $0x48] sm:$0xff]
        %v631 = vld [vmem:[%s365 + $0x50] sm:$0xff]
        %v632 = vld [vmem:[%s365 + $0x58] sm:$0xff]
        %v633 = vld [vmem:[%s365 + $0x60] sm:$0xff]
        %v634 = vld [vmem:[%s365 + $0x68] sm:$0xff]
        %v635 = vld [vmem:[%s365 + $0x70] sm:$0xff]
        %v636 = vld [vmem:[%s365 + $0x78] sm:$0xff]
        %637 = vxpose.xlu0.b32.start [1/16] %v621, 128
        %638 = vxpose.xlu0.b32.cont [2/16] %v622, 128
        %639 = vxpose.xlu0.b32.cont [3/16] %v623, 128
        %640 = vxpose.xlu0.b32.cont [4/16] %v624, 128
        %641 = vxpose.xlu0.b32.cont [5/16] %v625, 128
        %642 = vxpose.xlu0.b32.cont [6/16] %v626, 128
        %643 = vxpose.xlu0.b32.cont [7/16] %v627, 128
        %644 = vxpose.xlu0.b32.cont [8/16] %v628, 128
        %645 = vxpose.xlu0.b32.cont [9/16] %v629, 128
        %646 = vxpose.xlu0.b32.cont [10/16] %v630, 128
        %647 = vxpose.xlu0.b32.cont [11/16] %v631, 128
        %648 = vxpose.xlu0.b32.cont [12/16] %v632, 128
        %649 = vxpose.xlu0.b32.cont [13/16] %v633, 128
        %650 = vxpose.xlu0.b32.cont [14/16] %v634, 128
        %651 = vxpose.xlu0.b32.cont [15/16] %v635, 128
        %652 = vxpose.xlu0.b32.end [16/16] %v636, 128
        %v653 = vpop.trf.xlu0
        %v654 = vpop.trf.xlu0
        %v655 = vpop.trf.xlu0
        %v656 = vpop.trf.xlu0
        %v657 = vpop.trf.xlu0
        %v658 = vpop.trf.xlu0
        %v659 = vpop.trf.xlu0
        %v660 = vpop.trf.xlu0
        %v661 = vpop.trf.xlu0
        %v662 = vpop.trf.xlu0
        %v663 = vpop.trf.xlu0
        %v664 = vpop.trf.xlu0
        %v665 = vpop.trf.xlu0
        %v666 = vpop.trf.xlu0
        %v667 = vpop.trf.xlu0
        %v668 = vpop.trf.xlu0
        %669 = vmatprep.subr.mxu0 0.0
        %670 = vmatpush1.msra.mxu0 %v527
        %671 = vmatprep.subr.mxu0 0.0
        %672 = vmatpush1.msra.mxu0 %v532
        %673 = vmatprep.subr.mxu0 0.0
        %674 = vmatpush1.msra.mxu0 %v537
        %675 = vmatprep.subr.mxu0 0.0
        %676 = vmatpush1.msra.mxu0 %v542
        %677 = vmatprep.subr.mxu0 0.0
        %678 = vmatpush1.msra.mxu0 %v547
        %679 = vmatprep.subr.mxu0 0.0
        %680 = vmatpush1.msra.mxu0 %v552
        %681 = vmatprep.subr.mxu0 0.0
        %682 = vmatpush1.msra.mxu0 %v557
        %683 = vmatprep.subr.mxu0 0.0
        %684 = vmatpush1.msra.mxu0 %v562
        %685 = vmatprep.subr.mxu0 0.0
        %686 = vmatpush1.msra.mxu0 %v567
        %687 = vmatprep.subr.mxu0 0.0
        %688 = vmatpush1.msra.mxu0 %v572
        %689 = vmatprep.subr.mxu0 0.0
        %690 = vmatpush1.msra.mxu0 %v577
        %691 = vmatprep.subr.mxu0 0.0
        %692 = vmatpush1.msra.mxu0 %v582
        %693 = vmatprep.subr.mxu0 0.0
        %694 = vmatpush1.msra.mxu0 %v587
        %695 = vmatprep.subr.mxu0 0.0
        %696 = vmatpush1.msra.mxu0 %v592
        %697 = vmatprep.subr.mxu0 0.0
        %698 = vmatpush1.msra.mxu0 %v597
        %699 = vmatprep.subr.mxu0 0.0
        %700 = vmatpush1.msra.mxu0 %v602
        %701 = vmatprep.subr.mxu0 0.0
        %702 = vmatpush1.msra.mxu0 0.0
        %703 = vmatprep.subr.mxu0 0.0
        %704 = vmatpush1.msra.mxu0 0.0
        %705 = vmatprep.subr.mxu0 0.0
        %706 = vmatpush1.msra.mxu0 0.0
        %707 = vmatprep.subr.mxu0 0.0
        %708 = vmatpush1.msra.mxu0 0.0
        %709 = vmatprep.subr.mxu0 0.0
        %710 = vmatpush1.msra.mxu0 0.0
        %711 = vmatprep.subr.mxu0 0.0
        %712 = vmatpush1.msra.mxu0 0.0
        %713 = vmatprep.subr.mxu0 0.0
        %714 = vmatpush1.msra.mxu0 0.0
        %715 = vmatprep.subr.mxu0 0.0
        %716 = vmatpush1.msra.mxu0 0.0
        %717 = vmatprep.subr.mxu0 0.0
        %718 = vmatpush1.msra.mxu0 0.0
        %719 = vmatprep.subr.mxu0 0.0
        %720 = vmatpush1.msra.mxu0 0.0
        %721 = vmatprep.subr.mxu0 0.0
        %722 = vmatpush1.msra.mxu0 0.0
        %723 = vmatprep.subr.mxu0 0.0
        %724 = vmatpush1.msra.mxu0 0.0
        %725 = vmatprep.subr.mxu0 0.0
        %726 = vmatpush1.msra.mxu0 0.0
        %727 = vmatprep.subr.mxu0 0.0
        %728 = vmatpush1.msra.mxu0 0.0
        %729 = vmatprep.subr.mxu0 0.0
        %730 = vmatpush1.msra.mxu0 0.0
        %731 = vmatprep.subr.mxu0 0.0
        %732 = vmatpush1.msra.mxu0 0.0
        %733 = vmatprep.mubr.f32.mxu0 0.0
        %734 = vmatmul.mubr.f32.gmra.mrb[0].mxu0 %v653
        %v735 = vpop.f32.mrb[0].mxu0
        %v736 = vadd.f32 0.0, %v735
        %v737 = vpop.f32.mrb[0].mxu0
        %738 = vmatprep.mubr.f32.mxu0 0.0
        %739 = vmatmul.mubr.f32.gmra.mrb[0].mxu0 %v654
        %v740 = vpop.f32.mrb[0].mxu0
        %v741 = vadd.f32 0.0, %v740
        %v742 = vpop.f32.mrb[0].mxu0
        %743 = vmatprep.mubr.f32.mxu0 0.0
        %744 = vmatmul.mubr.f32.gmra.mrb[0].mxu0 %v655
        %v745 = vpop.f32.mrb[0].mxu0
        %v746 = vadd.f32 0.0, %v745
        %v747 = vpop.f32.mrb[0].mxu0
        %748 = vmatprep.mubr.f32.mxu0 0.0
        %749 = vmatmul.mubr.f32.gmra.mrb[0].mxu0 %v656
        %v750 = vpop.f32.mrb[0].mxu0
        %v751 = vadd.f32 0.0, %v750
        %v752 = vpop.f32.mrb[0].mxu0
        %753 = vmatprep.mubr.f32.mxu0 0.0
        %754 = vmatmul.mubr.f32.gmra.mrb[0].mxu0 %v657
        %v755 = vpop.f32.mrb[0].mxu0
        %v756 = vadd.f32 0.0, %v755
        %v757 = vpop.f32.mrb[0].mxu0
        %758 = vmatprep.mubr.f32.mxu0 0.0
        %759 = vmatmul.mubr.f32.gmra.mrb[0].mxu0 %v658
        %v760 = vpop.f32.mrb[0].mxu0
        %v761 = vadd.f32 0.0, %v760
        %v762 = vpop.f32.mrb[0].mxu0
        %763 = vmatprep.mubr.f32.mxu0 0.0
        %764 = vmatmul.mubr.f32.gmra.mrb[0].mxu0 %v659
        %v765 = vpop.f32.mrb[0].mxu0
        %v766 = vadd.f32 0.0, %v765
        %v767 = vpop.f32.mrb[0].mxu0
        %768 = vmatprep.mubr.f32.mxu0 0.0
        %769 = vmatmul.mubr.f32.gmra.mrb[0].mxu0 %v660
        %v770 = vpop.f32.mrb[0].mxu0
        %v771 = vadd.f32 0.0, %v770
        %v772 = vpop.f32.mrb[0].mxu0
        %773 = vmatprep.mubr.f32.mxu0 0.0
        %774 = vmatmul.mubr.f32.gmra.mrb[0].mxu0 %v661
        %v775 = vpop.f32.mrb[0].mxu0
        %v776 = vadd.f32 0.0, %v775
        %v777 = vpop.f32.mrb[0].mxu0
        %778 = vmatprep.mubr.f32.mxu0 0.0
        %779 = vmatmul.mubr.f32.gmra.mrb[0].mxu0 %v662
        %v780 = vpop.f32.mrb[0].mxu0
        %v781 = vadd.f32 0.0, %v780
        %v782 = vpop.f32.mrb[0].mxu0
        %783 = vmatprep.mubr.f32.mxu0 0.0
        %784 = vmatmul.mubr.f32.gmra.mrb[0].mxu0 %v663
        %v785 = vpop.f32.mrb[0].mxu0
        %v786 = vadd.f32 0.0, %v785
        %v787 = vpop.f32.mrb[0].mxu0
        %788 = vmatprep.mubr.f32.mxu0 0.0
        %789 = vmatmul.mubr.f32.gmra.mrb[0].mxu0 %v664
        %v790 = vpop.f32.mrb[0].mxu0
        %v791 = vadd.f32 0.0, %v790
        %v792 = vpop.f32.mrb[0].mxu0
        %793 = vmatprep.mubr.f32.mxu0 0.0
        %794 = vmatmul.mubr.f32.gmra.mrb[0].mxu0 %v665
        %v795 = vpop.f32.mrb[0].mxu0
        %v796 = vadd.f32 0.0, %v795
        %v797 = vpop.f32.mrb[0].mxu0
        %798 = vmatprep.mubr.f32.mxu0 0.0
        %799 = vmatmul.mubr.f32.gmra.mrb[0].mxu0 %v666
        %v800 = vpop.f32.mrb[0].mxu0
        %v801 = vadd.f32 0.0, %v800
        %v802 = vpop.f32.mrb[0].mxu0
        %803 = vmatprep.mubr.f32.mxu0 0.0
        %804 = vmatmul.mubr.f32.gmra.mrb[0].mxu0 %v667
        %v805 = vpop.f32.mrb[0].mxu0
        %v806 = vadd.f32 0.0, %v805
        %v807 = vpop.f32.mrb[0].mxu0
        %808 = vmatprep.mubr.f32.mxu0 0.0
        %809 = vmatmul.mubr.f32.gmra.mrb[0].mxu0 %v668
        %v810 = vpop.f32.mrb[0].mxu0
        %v811 = vadd.f32 0.0, %v810
        %v812 = vpop.f32.mrb[0].mxu0
        %813 = vdwg.mxu0
        %v814 = vld [vmem:[#allocation8] sm:$0xff]
        %v815 = vld [vmem:[#allocation8 + $0x8] sm:$0xff]
        %v816 = vld [vmem:[#allocation8 + $0x10] sm:$0xff]
        %v817 = vld [vmem:[#allocation8 + $0x18] sm:$0xff]
        %v818 = vld [vmem:[#allocation8 + $0x20] sm:$0xff]
        %v819 = vld [vmem:[#allocation8 + $0x28] sm:$0xff]
        %v820 = vld [vmem:[#allocation8 + $0x30] sm:$0xff]
        %v821 = vld [vmem:[#allocation8 + $0x38] sm:$0xff]
        %v822 = vld [vmem:[#allocation8 + $0x40] sm:$0xff]
        %v823 = vld [vmem:[#allocation8 + $0x48] sm:$0xff]
        %v824 = vld [vmem:[#allocation8 + $0x50] sm:$0xff]
        %v825 = vld [vmem:[#allocation8 + $0x58] sm:$0xff]
        %v826 = vld [vmem:[#allocation8 + $0x60] sm:$0xff]
        %v827 = vld [vmem:[#allocation8 + $0x68] sm:$0xff]
        %v828 = vld [vmem:[#allocation8 + $0x70] sm:$0xff]
        %v829 = vld [vmem:[#allocation8 + $0x78] sm:$0xff]
        %830 = vxpose.xlu0.b32.start [1/16] %v814, 128
        %831 = vxpose.xlu0.b32.cont [2/16] %v815, 128
        %832 = vxpose.xlu0.b32.cont [3/16] %v816, 128
        %833 = vxpose.xlu0.b32.cont [4/16] %v817, 128
        %834 = vxpose.xlu0.b32.cont [5/16] %v818, 128
        %835 = vxpose.xlu0.b32.cont [6/16] %v819, 128
        %836 = vxpose.xlu0.b32.cont [7/16] %v820, 128
        %837 = vxpose.xlu0.b32.cont [8/16] %v821, 128
        %838 = vxpose.xlu0.b32.cont [9/16] %v822, 128
        %839 = vxpose.xlu0.b32.cont [10/16] %v823, 128
        %840 = vxpose.xlu0.b32.cont [11/16] %v824, 128
        %841 = vxpose.xlu0.b32.cont [12/16] %v825, 128
        %842 = vxpose.xlu0.b32.cont [13/16] %v826, 128
        %843 = vxpose.xlu0.b32.cont [14/16] %v827, 128
        %844 = vxpose.xlu0.b32.cont [15/16] %v828, 128
        %845 = vxpose.xlu0.b32.end [16/16] %v829, 128
        %v846 = vpop.trf.xlu0
        %v847 = vpop.trf.xlu0
        %v848 = vpop.trf.xlu0
        %v849 = vpop.trf.xlu0
        %v850 = vpop.trf.xlu0
        %v851 = vpop.trf.xlu0
        %v852 = vpop.trf.xlu0
        %v853 = vpop.trf.xlu0
        %v854 = vpop.trf.xlu0
        %v855 = vpop.trf.xlu0
        %v856 = vpop.trf.xlu0
        %v857 = vpop.trf.xlu0
        %v858 = vpop.trf.xlu0
        %v859 = vpop.trf.xlu0
        %v860 = vpop.trf.xlu0
        %v861 = vpop.trf.xlu0
        %862 = vmatprep.subr.mxu0 0.0
        %863 = vmatpush1.msra.mxu0 %v736
        %864 = vmatprep.subr.mxu0 0.0
        %865 = vmatpush1.msra.mxu0 %v741
        %866 = vmatprep.subr.mxu0 0.0
        %867 = vmatpush1.msra.mxu0 %v746
        %868 = vmatprep.subr.mxu0 0.0
        %869 = vmatpush1.msra.mxu0 %v751
        %870 = vmatprep.subr.mxu0 0.0
        %871 = vmatpush1.msra.mxu0 %v756
        %872 = vmatprep.subr.mxu0 0.0
        %873 = vmatpush1.msra.mxu0 %v761
        %874 = vmatprep.subr.mxu0 0.0
        %875 = vmatpush1.msra.mxu0 %v766
        %876 = vmatprep.subr.mxu0 0.0
        %877 = vmatpush1.msra.mxu0 %v771
        %878 = vmatprep.subr.mxu0 0.0
        %879 = vmatpush1.msra.mxu0 %v776
        %880 = vmatprep.subr.mxu0 0.0
        %881 = vmatpush1.msra.mxu0 %v781
        %882 = vmatprep.subr.mxu0 0.0
        %883 = vmatpush1.msra.mxu0 %v786
        %884 = vmatprep.subr.mxu0 0.0
        %885 = vmatpush1.msra.mxu0 %v791
        %886 = vmatprep.subr.mxu0 0.0
        %887 = vmatpush1.msra.mxu0 %v796
        %888 = vmatprep.subr.mxu0 0.0
        %889 = vmatpush1.msra.mxu0 %v801
        %890 = vmatprep.subr.mxu0 0.0
        %891 = vmatpush1.msra.mxu0 %v806
        %892 = vmatprep.subr.mxu0 0.0
        %893 = vmatpush1.msra.mxu0 %v811
        %894 = vmatprep.subr.mxu0 0.0
        %895 = vmatpush1.msra.mxu0 0.0
        %896 = vmatprep.subr.mxu0 0.0
        %897 = vmatpush1.msra.mxu0 0.0
        %898 = vmatprep.subr.mxu0 0.0
        %899 = vmatpush1.msra.mxu0 0.0
        %900 = vmatprep.subr.mxu0 0.0
        %901 = vmatpush1.msra.mxu0 0.0
        %902 = vmatprep.subr.mxu0 0.0
        %903 = vmatpush1.msra.mxu0 0.0
        %904 = vmatprep.subr.mxu0 0.0
        %905 = vmatpush1.msra.mxu0 0.0
        %906 = vmatprep.subr.mxu0 0.0
        %907 = vmatpush1.msra.mxu0 0.0
        %908 = vmatprep.subr.mxu0 0.0
        %909 = vmatpush1.msra.mxu0 0.0
        %910 = vmatprep.subr.mxu0 0.0
        %911 = vmatpush1.msra.mxu0 0.0
        %912 = vmatprep.subr.mxu0 0.0
        %913 = vmatpush1.msra.mxu0 0.0
        %914 = vmatprep.subr.mxu0 0.0
        %915 = vmatpush1.msra.mxu0 0.0
        %916 = vmatprep.subr.mxu0 0.0
        %917 = vmatpush1.msra.mxu0 0.0
        %918 = vmatprep.subr.mxu0 0.0
        %919 = vmatpush1.msra.mxu0 0.0
        %920 = vmatprep.subr.mxu0 0.0
        %921 = vmatpush1.msra.mxu0 0.0
        %922 = vmatprep.subr.mxu0 0.0
        %923 = vmatpush1.msra.mxu0 0.0
        %924 = vmatprep.subr.mxu0 0.0
        %925 = vmatpush1.msra.mxu0 0.0
        %926 = vmatprep.mubr.f32.mxu0 0.0
        %927 = vmatmul.mubr.f32.gmra.mrb[0].mxu0 %v846
        %v928 = vpop.f32.mrb[0].mxu0
        %v929 = vadd.f32 0.0, %v928
        %v930 = vpop.f32.mrb[0].mxu0
        %931 = vmatprep.mubr.f32.mxu0 0.0
        %932 = vmatmul.mubr.f32.gmra.mrb[0].mxu0 %v847
        %v933 = vpop.f32.mrb[0].mxu0
        %v934 = vadd.f32 0.0, %v933
        %v935 = vpop.f32.mrb[0].mxu0
        %936 = vmatprep.mubr.f32.mxu0 0.0
        %937 = vmatmul.mubr.f32.gmra.mrb[0].mxu0 %v848
        %v938 = vpop.f32.mrb[0].mxu0
        %v939 = vadd.f32 0.0, %v938
        %v940 = vpop.f32.mrb[0].mxu0
        %941 = vmatprep.mubr.f32.mxu0 0.0
        %942 = vmatmul.mubr.f32.gmra.mrb[0].mxu0 %v849
        %v943 = vpop.f32.mrb[0].mxu0
        %v944 = vadd.f32 0.0, %v943
        %v945 = vpop.f32.mrb[0].mxu0
        %946 = vmatprep.mubr.f32.mxu0 0.0
        %947 = vmatmul.mubr.f32.gmra.mrb[0].mxu0 %v850
        %v948 = vpop.f32.mrb[0].mxu0
        %v949 = vadd.f32 0.0, %v948
        %v950 = vpop.f32.mrb[0].mxu0
        %951 = vmatprep.mubr.f32.mxu0 0.0
        %952 = vmatmul.mubr.f32.gmra.mrb[0].mxu0 %v851
        %v953 = vpop.f32.mrb[0].mxu0
        %v954 = vadd.f32 0.0, %v953
        %v955 = vpop.f32.mrb[0].mxu0
        %956 = vmatprep.mubr.f32.mxu0 0.0
        %957 = vmatmul.mubr.f32.gmra.mrb[0].mxu0 %v852
        %v958 = vpop.f32.mrb[0].mxu0
        %v959 = vadd.f32 0.0, %v958
        %v960 = vpop.f32.mrb[0].mxu0
        %961 = vmatprep.mubr.f32.mxu0 0.0
        %962 = vmatmul.mubr.f32.gmra.mrb[0].mxu0 %v853
        %v963 = vpop.f32.mrb[0].mxu0
        %v964 = vadd.f32 0.0, %v963
        %v965 = vpop.f32.mrb[0].mxu0
        %966 = vmatprep.mubr.f32.mxu0 0.0
        %967 = vmatmul.mubr.f32.gmra.mrb[0].mxu0 %v854
        %v968 = vpop.f32.mrb[0].mxu0
        %v969 = vadd.f32 0.0, %v968
        %v970 = vpop.f32.mrb[0].mxu0
        %971 = vmatprep.mubr.f32.mxu0 0.0
        %972 = vmatmul.mubr.f32.gmra.mrb[0].mxu0 %v855
        %v973 = vpop.f32.mrb[0].mxu0
        %v974 = vadd.f32 0.0, %v973
        %v975 = vpop.f32.mrb[0].mxu0
        %976 = vmatprep.mubr.f32.mxu0 0.0
        %977 = vmatmul.mubr.f32.gmra.mrb[0].mxu0 %v856
        %v978 = vpop.f32.mrb[0].mxu0
        %v979 = vadd.f32 0.0, %v978
        %v980 = vpop.f32.mrb[0].mxu0
        %981 = vmatprep.mubr.f32.mxu0 0.0
        %982 = vmatmul.mubr.f32.gmra.mrb[0].mxu0 %v857
        %v983 = vpop.f32.mrb[0].mxu0
        %v984 = vadd.f32 0.0, %v983
        %v985 = vpop.f32.mrb[0].mxu0
        %986 = vmatprep.mubr.f32.mxu0 0.0
        %987 = vmatmul.mubr.f32.gmra.mrb[0].mxu0 %v858
        %v988 = vpop.f32.mrb[0].mxu0
        %v989 = vadd.f32 0.0, %v988
        %v990 = vpop.f32.mrb[0].mxu0
        %991 = vmatprep.mubr.f32.mxu0 0.0
        %992 = vmatmul.mubr.f32.gmra.mrb[0].mxu0 %v859
        %v993 = vpop.f32.mrb[0].mxu0
        %v994 = vadd.f32 0.0, %v993
        %v995 = vpop.f32.mrb[0].mxu0
        %996 = vmatprep.mubr.f32.mxu0 0.0
        %997 = vmatmul.mubr.f32.gmra.mrb[0].mxu0 %v860
        %v998 = vpop.f32.mrb[0].mxu0
        %v999 = vadd.f32 0.0, %v998
        %v1000 = vpop.f32.mrb[0].mxu0
        %1001 = vmatprep.mubr.f32.mxu0 0.0
        %1002 = vmatmul.mubr.f32.gmra.mrb[0].mxu0 %v861
        %v1003 = vpop.f32.mrb[0].mxu0
        %v1004 = vadd.f32 0.0, %v1003
        %v1005 = vpop.f32.mrb[0].mxu0
        %1006 = vdwg.mxu0
        %v1007 = vld [vmem:[#allocation5] sm:$0xff]
        %v1008 = vld [vmem:[#allocation5 + $0x8] sm:$0xff]
        %v1009 = vld [vmem:[#allocation5 + $0x10] sm:$0xff]
        %v1010 = vld [vmem:[#allocation5 + $0x18] sm:$0xff]
        %v1011 = vld [vmem:[#allocation5 + $0x20] sm:$0xff]
        %v1012 = vld [vmem:[#allocation5 + $0x28] sm:$0xff]
        %v1013 = vld [vmem:[#allocation5 + $0x30] sm:$0xff]
        %v1014 = vld [vmem:[#allocation5 + $0x38] sm:$0xff]
        %v1015 = vld [vmem:[#allocation5 + $0x40] sm:$0xff]
        %v1016 = vld [vmem:[#allocation5 + $0x48] sm:$0xff]
        %v1017 = vld [vmem:[#allocation5 + $0x50] sm:$0xff]
        %v1018 = vld [vmem:[#allocation5 + $0x58] sm:$0xff]
        %v1019 = vld [vmem:[#allocation5 + $0x60] sm:$0xff]
        %v1020 = vld [vmem:[#allocation5 + $0x68] sm:$0xff]
        %v1021 = vld [vmem:[#allocation5 + $0x70] sm:$0xff]
        %v1022 = vld [vmem:[#allocation5 + $0x78] sm:$0xff]
        %1023 = vmatprep.subr.mxu0 0.0
        %1024 = vmatpush1.msra.mxu0 %v929
        %1025 = vmatprep.subr.mxu0 0.0
        %1026 = vmatpush1.msra.mxu0 %v934
        %1027 = vmatprep.subr.mxu0 0.0
        %1028 = vmatpush1.msra.mxu0 %v939
        %1029 = vmatprep.subr.mxu0 0.0
        %1030 = vmatpush1.msra.mxu0 %v944
        %1031 = vmatprep.subr.mxu0 0.0
        %1032 = vmatpush1.msra.mxu0 %v949
        %1033 = vmatprep.subr.mxu0 0.0
        %1034 = vmatpush1.msra.mxu0 %v954
        %1035 = vmatprep.subr.mxu0 0.0
        %1036 = vmatpush1.msra.mxu0 %v959
        %1037 = vmatprep.subr.mxu0 0.0
        %1038 = vmatpush1.msra.mxu0 %v964
        %1039 = vmatprep.subr.mxu0 0.0
        %1040 = vmatpush1.msra.mxu0 %v969
        %1041 = vmatprep.subr.mxu0 0.0
        %1042 = vmatpush1.msra.mxu0 %v974
        %1043 = vmatprep.subr.mxu0 0.0
        %1044 = vmatpush1.msra.mxu0 %v979
        %1045 = vmatprep.subr.mxu0 0.0
        %1046 = vmatpush1.msra.mxu0 %v984
        %1047 = vmatprep.subr.mxu0 0.0
        %1048 = vmatpush1.msra.mxu0 %v989
        %1049 = vmatprep.subr.mxu0 0.0
        %1050 = vmatpush1.msra.mxu0 %v994
        %1051 = vmatprep.subr.mxu0 0.0
        %1052 = vmatpush1.msra.mxu0 %v999
        %1053 = vmatprep.subr.mxu0 0.0
        %1054 = vmatpush1.msra.mxu0 %v1004
        %1055 = vmatprep.subr.mxu0 0.0
        %1056 = vmatpush1.msra.mxu0 0.0
        %1057 = vmatprep.subr.mxu0 0.0
        %1058 = vmatpush1.msra.mxu0 0.0
        %1059 = vmatprep.subr.mxu0 0.0
        %1060 = vmatpush1.msra.mxu0 0.0
        %1061 = vmatprep.subr.mxu0 0.0
        %1062 = vmatpush1.msra.mxu0 0.0
        %1063 = vmatprep.subr.mxu0 0.0
        %1064 = vmatpush1.msra.mxu0 0.0
        %1065 = vmatprep.subr.mxu0 0.0
        %1066 = vmatpush1.msra.mxu0 0.0
        %1067 = vmatprep.subr.mxu0 0.0
        %1068 = vmatpush1.msra.mxu0 0.0
        %1069 = vmatprep.subr.mxu0 0.0
        %1070 = vmatpush1.msra.mxu0 0.0
        %1071 = vmatprep.subr.mxu0 0.0
        %1072 = vmatpush1.msra.mxu0 0.0
        %1073 = vmatprep.subr.mxu0 0.0
        %1074 = vmatpush1.msra.mxu0 0.0
        %1075 = vmatprep.subr.mxu0 0.0
        %1076 = vmatpush1.msra.mxu0 0.0
        %1077 = vmatprep.subr.mxu0 0.0
        %1078 = vmatpush1.msra.mxu0 0.0
        %1079 = vmatprep.subr.mxu0 0.0
        %1080 = vmatpush1.msra.mxu0 0.0
        %1081 = vmatprep.subr.mxu0 0.0
        %1082 = vmatpush1.msra.mxu0 0.0
        %1083 = vmatprep.subr.mxu0 0.0
        %1084 = vmatpush1.msra.mxu0 0.0
        %1085 = vmatprep.subr.mxu0 0.0
        %1086 = vmatpush1.msra.mxu0 0.0
        %1087 = vmatprep.mubr.f32.mxu0 0.0
        %1088 = vmatmul.mubr.f32.gmra.mrb[0].mxu0 %v1007
        %v1089 = vpop.f32.mrb[0].mxu0
        %v1090 = vadd.f32 0.0, %v1089
        %v1091 = vpop.f32.mrb[0].mxu0
        %1092 = vmatprep.mubr.f32.mxu0 0.0
        %1093 = vmatmul.mubr.f32.gmra.mrb[0].mxu0 %v1008
        %v1094 = vpop.f32.mrb[0].mxu0
        %v1095 = vadd.f32 0.0, %v1094
        %v1096 = vpop.f32.mrb[0].mxu0
        %1097 = vmatprep.mubr.f32.mxu0 0.0
        %1098 = vmatmul.mubr.f32.gmra.mrb[0].mxu0 %v1009
        %v1099 = vpop.f32.mrb[0].mxu0
        %v1100 = vadd.f32 0.0, %v1099
        %v1101 = vpop.f32.mrb[0].mxu0
        %1102 = vmatprep.mubr.f32.mxu0 0.0
        %1103 = vmatmul.mubr.f32.gmra.mrb[0].mxu0 %v1010
        %v1104 = vpop.f32.mrb[0].mxu0
        %v1105 = vadd.f32 0.0, %v1104
        %v1106 = vpop.f32.mrb[0].mxu0
        %1107 = vmatprep.mubr.f32.mxu0 0.0
        %1108 = vmatmul.mubr.f32.gmra.mrb[0].mxu0 %v1011
        %v1109 = vpop.f32.mrb[0].mxu0
        %v1110 = vadd.f32 0.0, %v1109
        %v1111 = vpop.f32.mrb[0].mxu0
        %1112 = vmatprep.mubr.f32.mxu0 0.0
        %1113 = vmatmul.mubr.f32.gmra.mrb[0].mxu0 %v1012
        %v1114 = vpop.f32.mrb[0].mxu0
        %v1115 = vadd.f32 0.0, %v1114
        %v1116 = vpop.f32.mrb[0].mxu0
        %1117 = vmatprep.mubr.f32.mxu0 0.0
        %1118 = vmatmul.mubr.f32.gmra.mrb[0].mxu0 %v1013
        %v1119 = vpop.f32.mrb[0].mxu0
        %v1120 = vadd.f32 0.0, %v1119
        %v1121 = vpop.f32.mrb[0].mxu0
        %1122 = vmatprep.mubr.f32.mxu0 0.0
        %1123 = vmatmul.mubr.f32.gmra.mrb[0].mxu0 %v1014
        %v1124 = vpop.f32.mrb[0].mxu0
        %v1125 = vadd.f32 0.0, %v1124
        %v1126 = vpop.f32.mrb[0].mxu0
        %1127 = vmatprep.mubr.f32.mxu0 0.0
        %1128 = vmatmul.mubr.f32.gmra.mrb[0].mxu0 %v1015
        %v1129 = vpop.f32.mrb[0].mxu0
        %v1130 = vadd.f32 0.0, %v1129
        %v1131 = vpop.f32.mrb[0].mxu0
        %1132 = vmatprep.mubr.f32.mxu0 0.0
        %1133 = vmatmul.mubr.f32.gmra.mrb[0].mxu0 %v1016
        %v1134 = vpop.f32.mrb[0].mxu0
        %v1135 = vadd.f32 0.0, %v1134
        %v1136 = vpop.f32.mrb[0].mxu0
        %1137 = vmatprep.mubr.f32.mxu0 0.0
        %1138 = vmatmul.mubr.f32.gmra.mrb[0].mxu0 %v1017
        %v1139 = vpop.f32.mrb[0].mxu0
        %v1140 = vadd.f32 0.0, %v1139
        %v1141 = vpop.f32.mrb[0].mxu0
        %1142 = vmatprep.mubr.f32.mxu0 0.0
        %1143 = vmatmul.mubr.f32.gmra.mrb[0].mxu0 %v1018
        %v1144 = vpop.f32.mrb[0].mxu0
        %v1145 = vadd.f32 0.0, %v1144
        %v1146 = vpop.f32.mrb[0].mxu0
        %1147 = vmatprep.mubr.f32.mxu0 0.0
        %1148 = vmatmul.mubr.f32.gmra.mrb[0].mxu0 %v1019
        %v1149 = vpop.f32.mrb[0].mxu0
        %v1150 = vadd.f32 0.0, %v1149
        %v1151 = vpop.f32.mrb[0].mxu0
        %1152 = vmatprep.mubr.f32.mxu0 0.0
        %1153 = vmatmul.mubr.f32.gmra.mrb[0].mxu0 %v1020
        %v1154 = vpop.f32.mrb[0].mxu0
        %v1155 = vadd.f32 0.0, %v1154
        %v1156 = vpop.f32.mrb[0].mxu0
        %1157 = vmatprep.mubr.f32.mxu0 0.0
        %1158 = vmatmul.mubr.f32.gmra.mrb[0].mxu0 %v1021
        %v1159 = vpop.f32.mrb[0].mxu0
        %v1160 = vadd.f32 0.0, %v1159
        %v1161 = vpop.f32.mrb[0].mxu0
        %1162 = vmatprep.mubr.f32.mxu0 0.0
        %1163 = vmatmul.mubr.f32.gmra.mrb[0].mxu0 %v1022
        %v1164 = vpop.f32.mrb[0].mxu0
        %v1165 = vadd.f32 0.0, %v1164
        %v1166 = vpop.f32.mrb[0].mxu0
        %1167 = vdwg.mxu0
        %v1168 = vmul.f32 %v1090, 2.0
        %v1169 = vmul.f32 %v1095, 2.0
        %v1170 = vmul.f32 %v1100, 2.0
        %v1171 = vmul.f32 %v1105, 2.0
        %v1172 = vmul.f32 %v1110, 2.0
        %v1173 = vmul.f32 %v1115, 2.0
        %v1174 = vmul.f32 %v1120, 2.0
        %v1175 = vmul.f32 %v1125, 2.0
        %v1176 = vmul.f32 %v1130, 2.0
        %v1177 = vmul.f32 %v1135, 2.0
        %v1178 = vmul.f32 %v1140, 2.0
        %v1179 = vmul.f32 %v1145, 2.0
        %v1180 = vmul.f32 %v1150, 2.0
        %v1181 = vmul.f32 %v1155, 2.0
        %v1182 = vmul.f32 %v1160, 2.0
        %v1183 = vmul.f32 %v1165, 2.0
        %v1184 = vld [vmem:[%s352] sm:$0xff]
        %v1185 = vld [vmem:[%s352 + $0x8] sm:$0xff]
        %v1186 = vld [vmem:[%s352 + $0x10] sm:$0xff]
        %v1187 = vld [vmem:[%s352 + $0x18] sm:$0xff]
        %v1188 = vld [vmem:[%s352 + $0x20] sm:$0xff]
        %v1189 = vld [vmem:[%s352 + $0x28] sm:$0xff]
        %v1190 = vld [vmem:[%s352 + $0x30] sm:$0xff]
        %v1191 = vld [vmem:[%s352 + $0x38] sm:$0xff]
        %v1192 = vld [vmem:[%s352 + $0x40] sm:$0xff]
        %v1193 = vld [vmem:[%s352 + $0x48] sm:$0xff]
        %v1194 = vld [vmem:[%s352 + $0x50] sm:$0xff]
        %v1195 = vld [vmem:[%s352 + $0x58] sm:$0xff]
        %v1196 = vld [vmem:[%s352 + $0x60] sm:$0xff]
        %v1197 = vld [vmem:[%s352 + $0x68] sm:$0xff]
        %v1198 = vld [vmem:[%s352 + $0x70] sm:$0xff]
        %v1199 = vld [vmem:[%s352 + $0x78] sm:$0xff]
        %1200 = vmatprep.subr.mxu0 0.0
        %1201 = vmatpush1.msra.mxu0 %v1168
        %1202 = vmatprep.subr.mxu0 0.0
        %1203 = vmatpush1.msra.mxu0 %v1169
        %1204 = vmatprep.subr.mxu0 0.0
        %1205 = vmatpush1.msra.mxu0 %v1170
        %1206 = vmatprep.subr.mxu0 0.0
        %1207 = vmatpush1.msra.mxu0 %v1171
        %1208 = vmatprep.subr.mxu0 0.0
        %1209 = vmatpush1.msra.mxu0 %v1172
        %1210 = vmatprep.subr.mxu0 0.0
        %1211 = vmatpush1.msra.mxu0 %v1173
        %1212 = vmatprep.subr.mxu0 0.0
        %1213 = vmatpush1.msra.mxu0 %v1174
        %1214 = vmatprep.subr.mxu0 0.0
        %1215 = vmatpush1.msra.mxu0 %v1175
        %1216 = vmatprep.subr.mxu0 0.0
        %1217 = vmatpush1.msra.mxu0 %v1176
        %1218 = vmatprep.subr.mxu0 0.0
        %1219 = vmatpush1.msra.mxu0 %v1177
        %1220 = vmatprep.subr.mxu0 0.0
        %1221 = vmatpush1.msra.mxu0 %v1178
        %1222 = vmatprep.subr.mxu0 0.0
        %1223 = vmatpush1.msra.mxu0 %v1179
        %1224 = vmatprep.subr.mxu0 0.0
        %1225 = vmatpush1.msra.mxu0 %v1180
        %1226 = vmatprep.subr.mxu0 0.0
        %1227 = vmatpush1.msra.mxu0 %v1181
        %1228 = vmatprep.subr.mxu0 0.0
        %1229 = vmatpush1.msra.mxu0 %v1182
        %1230 = vmatprep.subr.mxu0 0.0
        %1231 = vmatpush1.msra.mxu0 %v1183
        %1232 = vmatprep.subr.mxu0 0.0
        %1233 = vmatpush1.msra.mxu0 0.0
        %1234 = vmatprep.subr.mxu0 0.0
        %1235 = vmatpush1.msra.mxu0 0.0
        %1236 = vmatprep.subr.mxu0 0.0
        %1237 = vmatpush1.msra.mxu0 0.0
        %1238 = vmatprep.subr.mxu0 0.0
        %1239 = vmatpush1.msra.mxu0 0.0
        %1240 = vmatprep.subr.mxu0 0.0
        %1241 = vmatpush1.msra.mxu0 0.0
        %1242 = vmatprep.subr.mxu0 0.0
        %1243 = vmatpush1.msra.mxu0 0.0
        %1244 = vmatprep.subr.mxu0 0.0
        %1245 = vmatpush1.msra.mxu0 0.0
        %1246 = vmatprep.subr.mxu0 0.0
        %1247 = vmatpush1.msra.mxu0 0.0
        %1248 = vmatprep.subr.mxu0 0.0
        %1249 = vmatpush1.msra.mxu0 0.0
        %1250 = vmatprep.subr.mxu0 0.0
        %1251 = vmatpush1.msra.mxu0 0.0
        %1252 = vmatprep.subr.mxu0 0.0
        %1253 = vmatpush1.msra.mxu0 0.0
        %1254 = vmatprep.subr.mxu0 0.0
        %1255 = vmatpush1.msra.mxu0 0.0
        %1256 = vmatprep.subr.mxu0 0.0
        %1257 = vmatpush1.msra.mxu0 0.0
        %1258 = vmatprep.subr.mxu0 0.0
        %1259 = vmatpush1.msra.mxu0 0.0
        %1260 = vmatprep.subr.mxu0 0.0
        %1261 = vmatpush1.msra.mxu0 0.0
        %1262 = vmatprep.subr.mxu0 0.0
        %1263 = vmatpush1.msra.mxu0 0.0
        %1264 = vmatprep.mubr.f32.mxu0 0.0
        %1265 = vmatmul.mubr.f32.gmra.mrb[0].mxu0 %v1184
        %v1266 = vpop.f32.mrb[0].mxu0
        %v1267 = vadd.f32 0.0, %v1266
        %v1268 = vpop.f32.mrb[0].mxu0
        %1269 = vmatprep.mubr.f32.mxu0 0.0
        %1270 = vmatmul.mubr.f32.gmra.mrb[0].mxu0 %v1185
        %v1271 = vpop.f32.mrb[0].mxu0
        %v1272 = vadd.f32 0.0, %v1271
        %v1273 = vpop.f32.mrb[0].mxu0
        %1274 = vmatprep.mubr.f32.mxu0 0.0
        %1275 = vmatmul.mubr.f32.gmra.mrb[0].mxu0 %v1186
        %v1276 = vpop.f32.mrb[0].mxu0
        %v1277 = vadd.f32 0.0, %v1276
        %v1278 = vpop.f32.mrb[0].mxu0
        %1279 = vmatprep.mubr.f32.mxu0 0.0
        %1280 = vmatmul.mubr.f32.gmra.mrb[0].mxu0 %v1187
        %v1281 = vpop.f32.mrb[0].mxu0
        %v1282 = vadd.f32 0.0, %v1281
        %v1283 = vpop.f32.mrb[0].mxu0
        %1284 = vmatprep.mubr.f32.mxu0 0.0
        %1285 = vmatmul.mubr.f32.gmra.mrb[0].mxu0 %v1188
        %v1286 = vpop.f32.mrb[0].mxu0
        %v1287 = vadd.f32 0.0, %v1286
        %v1288 = vpop.f32.mrb[0].mxu0
        %1289 = vmatprep.mubr.f32.mxu0 0.0
        %1290 = vmatmul.mubr.f32.gmra.mrb[0].mxu0 %v1189
        %v1291 = vpop.f32.mrb[0].mxu0
        %v1292 = vadd.f32 0.0, %v1291
        %v1293 = vpop.f32.mrb[0].mxu0
        %1294 = vmatprep.mubr.f32.mxu0 0.0
        %1295 = vmatmul.mubr.f32.gmra.mrb[0].mxu0 %v1190
        %v1296 = vpop.f32.mrb[0].mxu0
        %v1297 = vadd.f32 0.0, %v1296
        %v1298 = vpop.f32.mrb[0].mxu0
        %1299 = vmatprep.mubr.f32.mxu0 0.0
        %1300 = vmatmul.mubr.f32.gmra.mrb[0].mxu0 %v1191
        %v1301 = vpop.f32.mrb[0].mxu0
        %v1302 = vadd.f32 0.0, %v1301
        %v1303 = vpop.f32.mrb[0].mxu0
        %1304 = vmatprep.mubr.f32.mxu0 0.0
        %1305 = vmatmul.mubr.f32.gmra.mrb[0].mxu0 %v1192
        %v1306 = vpop.f32.mrb[0].mxu0
        %v1307 = vadd.f32 0.0, %v1306
        %v1308 = vpop.f32.mrb[0].mxu0
        %1309 = vmatprep.mubr.f32.mxu0 0.0
        %1310 = vmatmul.mubr.f32.gmra.mrb[0].mxu0 %v1193
        %v1311 = vpop.f32.mrb[0].mxu0
        %v1312 = vadd.f32 0.0, %v1311
        %v1313 = vpop.f32.mrb[0].mxu0
        %1314 = vmatprep.mubr.f32.mxu0 0.0
        %1315 = vmatmul.mubr.f32.gmra.mrb[0].mxu0 %v1194
        %v1316 = vpop.f32.mrb[0].mxu0
        %v1317 = vadd.f32 0.0, %v1316
        %v1318 = vpop.f32.mrb[0].mxu0
        %1319 = vmatprep.mubr.f32.mxu0 0.0
        %1320 = vmatmul.mubr.f32.gmra.mrb[0].mxu0 %v1195
        %v1321 = vpop.f32.mrb[0].mxu0
        %v1322 = vadd.f32 0.0, %v1321
        %v1323 = vpop.f32.mrb[0].mxu0
        %1324 = vmatprep.mubr.f32.mxu0 0.0
        %1325 = vmatmul.mubr.f32.gmra.mrb[0].mxu0 %v1196
        %v1326 = vpop.f32.mrb[0].mxu0
        %v1327 = vadd.f32 0.0, %v1326
        %v1328 = vpop.f32.mrb[0].mxu0
        %1329 = vmatprep.mubr.f32.mxu0 0.0
        %1330 = vmatmul.mubr.f32.gmra.mrb[0].mxu0 %v1197
        %v1331 = vpop.f32.mrb[0].mxu0
        %v1332 = vadd.f32 0.0, %v1331
        %v1333 = vpop.f32.mrb[0].mxu0
        %1334 = vmatprep.mubr.f32.mxu0 0.0
        %1335 = vmatmul.mubr.f32.gmra.mrb[0].mxu0 %v1198
        %v1336 = vpop.f32.mrb[0].mxu0
        %v1337 = vadd.f32 0.0, %v1336
        %v1338 = vpop.f32.mrb[0].mxu0
        %1339 = vmatprep.mubr.f32.mxu0 0.0
        %1340 = vmatmul.mubr.f32.gmra.mrb[0].mxu0 %v1199
        %v1341 = vpop.f32.mrb[0].mxu0
        %v1342 = vadd.f32 0.0, %v1341
        %v1343 = vpop.f32.mrb[0].mxu0
        %1344 = vdwg.mxu0
        %1345 = vst [vmem:[%s420] sm:$0xff] %v1267
        %1346 = vst [vmem:[%s420 + $0x8] sm:$0xff] %v1272
        %1347 = vst [vmem:[%s420 + $0x10] sm:$0xff] %v1277
        %1348 = vst [vmem:[%s420 + $0x18] sm:$0xff] %v1282
        %1349 = vst [vmem:[%s420 + $0x20] sm:$0xff] %v1287
        %1350 = vst [vmem:[%s420 + $0x28] sm:$0xff] %v1292
        %1351 = vst [vmem:[%s420 + $0x30] sm:$0xff] %v1297
        %1352 = vst [vmem:[%s420 + $0x38] sm:$0xff] %v1302
        %1353 = vst [vmem:[%s420 + $0x40] sm:$0xff] %v1307
        %1354 = vst [vmem:[%s420 + $0x48] sm:$0xff] %v1312
        %1355 = vst [vmem:[%s420 + $0x50] sm:$0xff] %v1317
        %1356 = vst [vmem:[%s420 + $0x58] sm:$0xff] %v1322
        %1357 = vst [vmem:[%s420 + $0x60] sm:$0xff] %v1327
        %1358 = vst [vmem:[%s420 + $0x68] sm:$0xff] %v1332
        %1359 = vst [vmem:[%s420 + $0x70] sm:$0xff] %v1337
        %1360 = vst [vmem:[%s420 + $0x78] sm:$0xff] %v1342
        %s1361 = sand.u32 %s181, 1
        %s1362 = scalar_lea.sflag [#allocation4], %s1361
        %s1363 = sand.u32 %s181, 1
        %s1364 = smul.addr %s1363, 128
        %s1365 = scalar_lea.vmem [#allocation12], %s1364
        %s1366 = sand.u32 %s207, 1
        %s1367 = scalar_lea.sflag [#allocation14], %s1366
        %s1368 = sand.u32 %s207, 1
        %s1369 = smul.addr %s1368, 128
        %s1370 = scalar_lea.vmem [#allocation13], %s1369
        // Predicated region
        $region69: #{tpu_custom_call.1} parent=43 // pred_check
          %p1371 = pneg %p191
        $region70: #{tpu_custom_call.1} parent=43 // pred_check_branch
          %1373 = sbr.rel (%p1371) target = $region72
        $region71: #{tpu_custom_call.1} parent=43 // pred_region
          %s1375 = ssub.s32 2048, 2048
          %1376 = vsyncadd %s1362, %s1375
          %s1377 = smul.addr %s32, 16
          %s1378 = smul.addr %s1377, 128
          %s1379 = scalar_lea.hbm %s6, %s1378
          %s1380 = sshll.u32 %s1365, 4
          %s1381 = int_to_ptr.vmem [resolvable:$true] %s1380
          %1386 = dma.vmem_to_hbm [thread:$0]  %s1381, 2048, %s1379, %s1362, 128, 128, 8
        $region72: #{tpu_custom_call.1} parent=43 // pred_fallthru
          _
        // Predicated region
        $region73: #{tpu_custom_call.1} parent=43 // pred_check
          %p1387 = pneg %p217
        $region74: #{tpu_custom_call.1} parent=43 // pred_check_branch
          %1389 = sbr.rel (%p1387) target = $region76
        $region75: #{tpu_custom_call.1} parent=43 // pred_region
          %s1391 = ssub.s32 2048, 2048
          %1392 = vsyncadd %s1367, %s1391
          %s1393 = smul.addr %s32, 16
          %s1394 = smul.addr %s1393, 128
          %s1395 = scalar_lea.hbm %s7, %s1394
          %s1396 = sshll.u32 %s1370, 4
          %s1397 = int_to_ptr.vmem [resolvable:$true] %s1396
          %1402 = dma.vmem_to_hbm [thread:$0]  %s1397, 2048, %s1395, %s1367, 128, 128, 8
        $region76: #{tpu_custom_call.1} parent=43 // pred_fallthru
          _
      $region44: #{tpu_custom_call.1} parent=5 // pred_fallthru
        _
      %p1403 = scmp.le.s32.totalorder 2, %s27
      // Predicated region
      $region77: #{tpu_custom_call.1} parent=5 // pred_check
        %p1404 = pneg %p1403
      $region78: #{tpu_custom_call.1} parent=5 // pred_check_branch
        %1406 = sbr.rel (%p1404) target = $region80
      $region79: #{tpu_custom_call.1} parent=5 // pred_region
        %s1407 = ssub.s32 %s27, 2
        // Predicated region
        $region81: #{tpu_custom_call.1} parent=79 // pred_check
          %p1408 = pneg %p197
        $region82: #{tpu_custom_call.1} parent=79 // pred_check_branch
          %1410 = sbr.rel (%p1408) target = $region84
        $region83: #{tpu_custom_call.1} parent=79 // pred_region
          %s1411 = sand.u32 %s182, 1
          %s1412 = scalar_lea.sflag [#allocation4], %s1411
          %s1413 = sand.u32 %s182, 1
          %s1414 = smul.addr %s1413, 128
          %s1415 = scalar_lea.vmem [#allocation12], %s1414
          %1416 = dma.done %s1412, 2048
        $region84: #{tpu_custom_call.1} parent=79 // pred_fallthru
          _
        // Predicated region
        $region85: #{tpu_custom_call.1} parent=79 // pred_check
          %p1417 = pneg %p223
        $region86: #{tpu_custom_call.1} parent=79 // pred_check_branch
          %1419 = sbr.rel (%p1417) target = $region88
        $region87: #{tpu_custom_call.1} parent=79 // pred_region
          %s1420 = sand.u32 %s208, 1
          %s1421 = scalar_lea.sflag [#allocation14], %s1420
          %s1422 = sand.u32 %s208, 1
          %s1423 = smul.addr %s1422, 128
          %s1424 = scalar_lea.vmem [#allocation13], %s1423
          %1425 = dma.done %s1421, 2048
        $region88: #{tpu_custom_call.1} parent=79 // pred_fallthru
          _
      $region80: #{tpu_custom_call.1} parent=5 // pred_fallthru
        _
    $region6: #{tpu_custom_call.1} parent=1 // loop_footer
      %s31 = sadd.s32 1, %s27
    $region7: #{tpu_custom_call.1} parent=1 // loop_footer_branch
      %26 = sbr.rel target = $region3
    $region8: #{tpu_custom_call.1} parent=1 // loop_exit
      _
    %1426 = vsyncpa [#allocation3], 1
    %s1427 = scalar_lea.sflag [#allocation3], 1
    %1428 = vsyncpa %s1427, 1
    %1429 = vsyncpa [#allocation6], 1
    %1430 = vsyncpa [#allocation10], 1
    %s1431 = scalar_lea.sflag [#allocation10], 1
    %1432 = vsyncpa %s1431, 1
    %1433 = vsyncpa [#allocation4], 1
    %s1434 = scalar_lea.sflag [#allocation4], 1
    %1435 = vsyncpa %s1434, 1
    %1436 = vsyncpa [#allocation14], 1
    %s1437 = scalar_lea.sflag [#allocation14], 1
    %1438 = vsyncpa %s1437, 1

</llo_original>
